<compile_context>
chip_gen: v6e
topology: v6e:2x2x1
jax: 0.10.0
libtpu: 0.0.40
codegen_flags: <defaults>
</compile_context>

<pallas_src>
import functools
import math

import jax
import jax.numpy as jnp
from jax.experimental import pallas as pl
from jax.experimental.pallas import tpu as pltpu


def compute_conv_output_size(size, k):
    return size - k + 1


# ----------------------------------------------------------------------------
# Fused conv + bias + ReLU + 2x2 max-pool kernel (NHWC, one image per grid step)
# ----------------------------------------------------------------------------
def _conv_relu_pool_kernel(x_ref, w_ref, b_ref, o_ref, *, k, Ho, Wo, Hp, Wp):
    """x_ref: (1, H, W, Cin) f32, w_ref: (k*k, Cin, Cout) bf16,
    b_ref: (1, Cout) f32, o_ref: (1, Hp, Wp, Cout) f32."""
    Cout = o_ref.shape[-1]
    bias = b_ref[...]                                              # (1, Cout)

    # One-hot selector extracting even columns (W direction of the 2x2 pool):
    # pooled[j] = q[2*j].  Using a one-hot matmul keeps everything on
    # well-supported ops (no strided slices / gathers).
    r_idx = jax.lax.broadcasted_iota(jnp.int32, (Wp, Wo - 1), 0)
    c_idx = jax.lax.broadcasted_iota(jnp.int32, (Wp, Wo - 1), 1)
    sel = (c_idx == 2 * r_idx).astype(jnp.float32)                 # (Wp, Wo-1)

    def row_body(i, carry):
        # Input rows [2i, 2i + k] cover conv-output rows 2i and 2i+1.
        rows = x_ref[0, pl.ds(2 * i, k + 1), :, :].astype(jnp.bfloat16)
        acc0 = jnp.zeros((Wo, Cout), jnp.float32)
        acc1 = jnp.zeros((Wo, Cout), jnp.float32)
        for di in range(k):
            for dj in range(k):
                wmat = w_ref[di * k + dj]                          # (Cin, Cout)
                acc0 = acc0 + jnp.dot(rows[di, dj:dj + Wo, :], wmat,
                                      preferred_element_type=jnp.float32)
                acc1 = acc1 + jnp.dot(rows[di + 1, dj:dj + Wo, :], wmat,
                                      preferred_element_type=jnp.float32)
        acc0 = jnp.maximum(acc0 + bias, 0.0)
        acc1 = jnp.maximum(acc1 + bias, 0.0)
        m = jnp.maximum(acc0, acc1)                                # H-pooled row pair
        q = jnp.maximum(m[:Wo - 1, :], m[1:, :])                   # q[w] = max(m[w], m[w+1])
        pooled = jnp.dot(sel, q, preferred_element_type=jnp.float32)   # (Wp, Cout)
        o_ref[0, pl.ds(i, 1), :, :] = pooled[None].astype(o_ref.dtype)
        return carry

    jax.lax.fori_loop(0, Hp, row_body, 0)


def conv_relu_pool_pallas(x, p):
    """x: (B, H, W, Cin) f32 NHWC.  Returns maxpool2x2(relu(conv(x))) NHWC."""
    w_taps, b, k = p["w"], p["b"], p["k"]
    B, H, W, Cin = x.shape
    kk, Cin2, Cout = w_taps.shape
    assert kk == k * k and Cin2 == Cin
    Ho, Wo = H - k + 1, W - k + 1
    Hp, Wp = Ho // 2, Wo // 2
    b2 = b.reshape(1, Cout)
    kernel = functools.partial(_conv_relu_pool_kernel,
                               k=k, Ho=Ho, Wo=Wo, Hp=Hp, Wp=Wp)
    return pl.pallas_call(
        kernel,
        out_shape=jax.ShapeDtypeStruct((B, Hp, Wp, Cout), jnp.float32),
        grid=(B,),
        in_specs=[
            pl.BlockSpec((1, H, W, Cin), lambda b_: (b_, 0, 0, 0)),
            pl.BlockSpec((k * k, Cin, Cout), lambda b_: (0, 0, 0)),
            pl.BlockSpec((1, Cout), lambda b_: (0, 0)),
        ],
        out_specs=pl.BlockSpec((1, Hp, Wp, Cout), lambda b_: (b_, 0, 0, 0)),
        compiler_params=pltpu.CompilerParams(
            dimension_semantics=("parallel",)),
    )(x, w_taps, b2)


# ----------------------------------------------------------------------------
# Tiled linear (bf16 weights, f32 accumulate) with fused bias + optional ReLU
# ----------------------------------------------------------------------------
def _linear_kernel(x_ref, w_ref, b_ref, o_ref, acc_ref, *, relu):
    @pl.when(pl.program_id(1) == 0)
    def _():
        acc_ref[...] = jnp.zeros_like(acc_ref)

    acc_ref[...] += jnp.dot(x_ref[...].astype(jnp.bfloat16), w_ref[...],
                            preferred_element_type=jnp.float32)

    @pl.when(pl.program_id(1) == pl.num_programs(1) - 1)
    def _():
        r = acc_ref[...] + b_ref[...]
        if relu:
            r = jnp.maximum(r, 0.0)
        o_ref[...] = r.astype(o_ref.dtype)


def linear_pallas(x, w, b, *, relu, tn=512, tk=1024):
    """x: (M, K) f32, w: (K, N) bf16, b: (N,) f32  ->  (M, N) f32."""
    M, K = x.shape
    K2, N = w.shape
    assert K == K2
    tn = min(tn, N)
    tk = min(tk, K)
    assert N % tn == 0 and K % tk == 0
    b2 = b.reshape(1, N)
    kernel = functools.partial(_linear_kernel, relu=relu)
    return pl.pallas_call(
        kernel,
        out_shape=jax.ShapeDtypeStruct((M, N), jnp.float32),
        grid=(N // tn, K // tk),
        in_specs=[
            pl.BlockSpec((M, tk), lambda j, kk: (0, kk)),
            pl.BlockSpec((tk, tn), lambda j, kk: (kk, j)),
            pl.BlockSpec((1, tn), lambda j, kk: (0, j)),
        ],
        out_specs=pl.BlockSpec((M, tn), lambda j, kk: (0, j)),
        scratch_shapes=[pltpu.VMEM((M, tn), jnp.float32)],
        compiler_params=pltpu.CompilerParams(
            dimension_semantics=("parallel", "arbitrary")),
    )(x, w, b2)


# ----------------------------------------------------------------------------
# Parameter construction (deterministic, synthetic, stored in kernel layout)
# ----------------------------------------------------------------------------
def init_alexnet_params(inputsize, taskcla, key):
    ncha, size, _ = inputsize
    k1 = size // 8
    k3 = size // 10
    s = compute_conv_output_size(size, k1) // 2
    s = compute_conv_output_size(s, k3) // 2
    s = compute_conv_output_size(s, 2) // 2
    feat = s * s * 256

    keys = jax.random.split(key, 2 * (5 + len(taskcla)))
    kit = iter(keys)

    def conv_param(cin, cout, k, cin_pad=None, cout_pad=None):
        cin_pad = cin if cin_pad is None else cin_pad
        cout_pad = cout if cout_pad is None else cout_pad
        fan_in = cin * k * k
        w = jax.random.normal(next(kit), (cout, cin, k, k),
                              jnp.float32) / math.sqrt(fan_in)
        b = jax.random.normal(next(kit), (cout,), jnp.float32) * 0.01
        # Zero-pad channels so the lane dim is 128-wide (unmasked stores);
        # padded channels stay exactly 0 through bias+ReLU and meet zero
        # weights downstream, so real-channel numerics are unchanged.
        w = jnp.pad(w, ((0, cout_pad - cout), (0, cin_pad - cin), (0, 0), (0, 0)))
        b = jnp.pad(b, (0, cout_pad - cout))
        # (Cout', Cin', k, k) -> taps-major (k*k, Cin', Cout') for the kernel.
        w_taps = jnp.transpose(w, (2, 3, 1, 0)).reshape(k * k, cin_pad, cout_pad)
        return {"w": w_taps.astype(jnp.bfloat16), "b": b, "k": k}

    def fc_param(fin, fout, fout_pad=None):
        fout_pad = fout if fout_pad is None else fout_pad
        w = jax.random.normal(next(kit), (fin, fout),
                              jnp.float32) / math.sqrt(fin)
        b = jax.random.normal(next(kit), (fout,), jnp.float32) * 0.01
        w = jnp.pad(w, ((0, 0), (0, fout_pad - fout)))
        b = jnp.pad(b, (0, fout_pad - fout))
        return {"w": w.astype(jnp.bfloat16), "b": b, "n": fout}

    params = {
        "conv1": conv_param(ncha, 64, k1, cout_pad=128),   # pad Cout 64 -> 128
        "conv3": conv_param(64, 128, k3, cin_pad=128),     # consume padded channels
        "conv5": conv_param(128, 256, 2),
        "fc1": fc_param(feat, 2048),
        "fc2": fc_param(2048, 2048),
        "last": [fc_param(2048, n, fout_pad=128) for _, n in taskcla],
    }
    return params


# ----------------------------------------------------------------------------
# Forward pass (matches Alexnet.forward, eval mode)
# ----------------------------------------------------------------------------
def alexnet_forward(params, t, x):
    """x: (B, ncha, H, W) NCHW, like the PyTorch module."""
    B = x.shape[0]
    h = jnp.transpose(x, (0, 2, 3, 1))                  # NHWC (channels on lanes)
    h = conv_relu_pool_pallas(h, params["conv1"])       # conv1+relu+pool (drop1 = id)
    h = conv_relu_pool_pallas(h, params["conv3"])       # conv3+relu+pool (drop1 = id)
    h = conv_relu_pool_pallas(h, params["conv5"])       # conv5+relu+pool (drop2 = id)
    # Flatten in NCHW order to mirror torch's h.view(B, -1).
    h = jnp.transpose(h, (0, 3, 1, 2)).reshape(B, -1)
    h = linear_pallas(h, params["fc1"]["w"], params["fc1"]["b"], relu=True)
    h = linear_pallas(h, params["fc2"]["w"], params["fc2"]["b"], relu=True)
    head = params["last"][t]
    y = linear_pallas(h, head["w"], head["b"], relu=False)
    return y[:, :head["n"]]
    # TODO(synk): avg_act activation caching and register_hook/save_grad
    # gradient bookkeeping have no Pallas equivalent; only the functional
    # forward output is produced (dropout layers are identity in eval mode).


# ----------------------------------------------------------------------------
# Main
# ----------------------------------------------------------------------------
if __name__ == "__main__":
    # Small CIFAR-like configuration: 3 channels, 32x32, batch 2.
    inputsize = (3, 32, 32)
    taskcla = [(0, 10), (1, 5)]
    t = 0

    key = jax.random.PRNGKey(0)
    xkey, pkey = jax.random.split(key)
    x = jax.random.normal(xkey, (2, *inputsize), jnp.float32)   # NCHW

    params = init_alexnet_params(inputsize, taskcla, pkey)

    y = alexnet_forward(params, t, x)
    y = jax.block_until_ready(y)
    assert y.shape == (2, taskcla[t][1]), y.shape
    assert bool(jnp.all(jnp.isfinite(y)))
    print("KERNEL_OK")
</pallas_src>

<mosaic_0001>
module attributes {stable_mosaic.version = 11 : i64} {
  func.func @_conv_relu_pool_kernel(%arg0: i32, %arg1: memref<1x32x32x3xf32, #tpu.memory_space<vmem>>, %arg2: memref<16x3x128xbf16, #tpu.memory_space<vmem>>, %arg3: memref<1x128xf32, #tpu.memory_space<vmem>>, %arg4: memref<1x14x14x128xf32, #tpu.memory_space<vmem>>) attributes {dimension_semantics = [#tpu.dimension_semantics<parallel>], iteration_bounds = array<i64: 2>, scalar_prefetch = 0 : i64, scratch_operands = 0 : i64, tpu.core_type = #tpu.core_type<tc>, window_params = [{transform_indices = @transform_0, window_bounds = array<i64: 1, 32, 32, 3>}, {pipeline_mode = #tpu.pipeline_mode<synchronous>, transform_indices = @transform_1, window_bounds = array<i64: 16, 3, 128>}, {pipeline_mode = #tpu.pipeline_mode<synchronous>, transform_indices = @transform_2, window_bounds = array<i64: 1, 128>}, {transform_indices = @transform_3, window_bounds = array<i64: 1, 14, 14, 128>}]} {
    %c0 = arith.constant 0 : index
    %c0_0 = arith.constant 0 : index
    %0 = vector.load %arg3[%c0, %c0_0] : memref<1x128xf32, #tpu.memory_space<vmem>>, vector<1x128xf32>
    %1 = tpu.iota {dimensions = array<i32: 0>} : vector<14x28xi32>
    %2 = tpu.iota {dimensions = array<i32: 1>} : vector<14x28xi32>
    %c2_i32 = arith.constant 2 : i32
    %3 = vector.broadcast %c2_i32 : i32 to vector<14x28xi32>
    %4 = arith.muli %3, %1 : vector<14x28xi32>
    %5 = arith.cmpi eq, %2, %4 : vector<14x28xi32>
    %6 = arith.extui %5 : vector<14x28xi1> to vector<14x28xi32>
    %7 = arith.sitofp %6 : vector<14x28xi32> to vector<14x28xf32>
    %c0_i32 = arith.constant 0 : i32
    %c14_i32 = arith.constant 14 : i32
    %8 = arith.addi %c0_i32, %c14_i32 : i32
    %c1_i32 = arith.constant 1 : i32
    scf.for %arg5 = %c0_i32 to %8 step %c1_i32  : i32 {
      %c2_i32_2 = arith.constant 2 : i32
      %9 = arith.muli %c2_i32_2, %arg5 : i32
      %c0_3 = arith.constant 0 : index
      %10 = arith.index_cast %9 : i32 to index
      %c0_4 = arith.constant 0 : index
      %c0_5 = arith.constant 0 : index
      %11 = vector.load %arg1[%c0_3, %10, %c0_4, %c0_5] : memref<1x32x32x3xf32, #tpu.memory_space<vmem>>, vector<1x5x32x3xf32>
      %12 = vector.shape_cast %11 : vector<1x5x32x3xf32> to vector<5x32x3xf32>
      %13 = arith.truncf %12 : vector<5x32x3xf32> to vector<5x32x3xbf16>
      %cst = arith.constant 0.000000e+00 : f32
      %14 = vector.broadcast %cst : f32 to vector<29x128xf32>
      %cst_6 = arith.constant 0.000000e+00 : f32
      %15 = vector.broadcast %cst_6 : f32 to vector<29x128xf32>
      %c0_7 = arith.constant 0 : index
      %c0_8 = arith.constant 0 : index
      %c0_9 = arith.constant 0 : index
      %16 = vector.load %arg2[%c0_7, %c0_8, %c0_9] : memref<16x3x128xbf16, #tpu.memory_space<vmem>>, vector<1x3x128xbf16>
      %17 = vector.shape_cast %16 : vector<1x3x128xbf16> to vector<3x128xbf16>
      %18 = vector.extract_strided_slice %13 {offsets = [0, 0, 0], sizes = [1, 29, 3], strides = [1, 1, 1]} : vector<5x32x3xbf16> to vector<1x29x3xbf16>
      %19 = vector.shape_cast %18 : vector<1x29x3xbf16> to vector<29x3xbf16>
      %cst_10 = arith.constant dense<0.000000e+00> : vector<29x128xf32>
      %20 = tpu.matmul %19, %17, %cst_10 {dimension_numbers = #tpu.dot_dimension_numbers<[1], [0], [0], [1], [0, 0, 1, 1], [], []>} : vector<29x3xbf16>, vector<3x128xbf16>, vector<29x128xf32> -> vector<29x128xf32>
      %21 = arith.addf %14, %20 : vector<29x128xf32>
      %22 = vector.extract_strided_slice %13 {offsets = [1, 0, 0], sizes = [1, 29, 3], strides = [1, 1, 1]} : vector<5x32x3xbf16> to vector<1x29x3xbf16>
      %23 = vector.shape_cast %22 : vector<1x29x3xbf16> to vector<29x3xbf16>
      %cst_11 = arith.constant dense<0.000000e+00> : vector<29x128xf32>
      %24 = tpu.matmul %23, %17, %cst_11 {dimension_numbers = #tpu.dot_dimension_numbers<[1], [0], [0], [1], [0, 0, 1, 1], [], []>} : vector<29x3xbf16>, vector<3x128xbf16>, vector<29x128xf32> -> vector<29x128xf32>
      %25 = arith.addf %15, %24 : vector<29x128xf32>
      %c1 = arith.constant 1 : index
      %c0_12 = arith.constant 0 : index
      %c0_13 = arith.constant 0 : index
      %26 = vector.load %arg2[%c1, %c0_12, %c0_13] : memref<16x3x128xbf16, #tpu.memory_space<vmem>>, vector<1x3x128xbf16>
      %27 = vector.shape_cast %26 : vector<1x3x128xbf16> to vector<3x128xbf16>
      %28 = vector.extract_strided_slice %13 {offsets = [0, 1, 0], sizes = [1, 29, 3], strides = [1, 1, 1]} : vector<5x32x3xbf16> to vector<1x29x3xbf16>
      %29 = vector.shape_cast %28 : vector<1x29x3xbf16> to vector<29x3xbf16>
      %cst_14 = arith.constant dense<0.000000e+00> : vector<29x128xf32>
      %30 = tpu.matmul %29, %27, %cst_14 {dimension_numbers = #tpu.dot_dimension_numbers<[1], [0], [0], [1], [0, 0, 1, 1], [], []>} : vector<29x3xbf16>, vector<3x128xbf16>, vector<29x128xf32> -> vector<29x128xf32>
      %31 = arith.addf %21, %30 : vector<29x128xf32>
      %32 = vector.extract_strided_slice %13 {offsets = [1, 1, 0], sizes = [1, 29, 3], strides = [1, 1, 1]} : vector<5x32x3xbf16> to vector<1x29x3xbf16>
      %33 = vector.shape_cast %32 : vector<1x29x3xbf16> to vector<29x3xbf16>
      %cst_15 = arith.constant dense<0.000000e+00> : vector<29x128xf32>
      %34 = tpu.matmul %33, %27, %cst_15 {dimension_numbers = #tpu.dot_dimension_numbers<[1], [0], [0], [1], [0, 0, 1, 1], [], []>} : vector<29x3xbf16>, vector<3x128xbf16>, vector<29x128xf32> -> vector<29x128xf32>
      %35 = arith.addf %25, %34 : vector<29x128xf32>
      %c2 = arith.constant 2 : index
      %c0_16 = arith.constant 0 : index
      %c0_17 = arith.constant 0 : index
      %36 = vector.load %arg2[%c2, %c0_16, %c0_17] : memref<16x3x128xbf16, #tpu.memory_space<vmem>>, vector<1x3x128xbf16>
      %37 = vector.shape_cast %36 : vector<1x3x128xbf16> to vector<3x128xbf16>
      %38 = vector.extract_strided_slice %13 {offsets = [0, 2, 0], sizes = [1, 29, 3], strides = [1, 1, 1]} : vector<5x32x3xbf16> to vector<1x29x3xbf16>
      %39 = vector.shape_cast %38 : vector<1x29x3xbf16> to vector<29x3xbf16>
      %cst_18 = arith.constant dense<0.000000e+00> : vector<29x128xf32>
      %40 = tpu.matmul %39, %37, %cst_18 {dimension_numbers = #tpu.dot_dimension_numbers<[1], [0], [0], [1], [0, 0, 1, 1], [], []>} : vector<29x3xbf16>, vector<3x128xbf16>, vector<29x128xf32> -> vector<29x128xf32>
      %41 = arith.addf %31, %40 : vector<29x128xf32>
      %42 = vector.extract_strided_slice %13 {offsets = [1, 2, 0], sizes = [1, 29, 3], strides = [1, 1, 1]} : vector<5x32x3xbf16> to vector<1x29x3xbf16>
      %43 = vector.shape_cast %42 : vector<1x29x3xbf16> to vector<29x3xbf16>
      %cst_19 = arith.constant dense<0.000000e+00> : vector<29x128xf32>
      %44 = tpu.matmul %43, %37, %cst_19 {dimension_numbers = #tpu.dot_dimension_numbers<[1], [0], [0], [1], [0, 0, 1, 1], [], []>} : vector<29x3xbf16>, vector<3x128xbf16>, vector<29x128xf32> -> vector<29x128xf32>
      %45 = arith.addf %35, %44 : vector<29x128xf32>
      %c3 = arith.constant 3 : index
      %c0_20 = arith.constant 0 : index
      %c0_21 = arith.constant 0 : index
      %46 = vector.load %arg2[%c3, %c0_20, %c0_21] : memref<16x3x128xbf16, #tpu.memory_space<vmem>>, vector<1x3x128xbf16>
      %47 = vector.shape_cast %46 : vector<1x3x128xbf16> to vector<3x128xbf16>
      %48 = vector.extract_strided_slice %13 {offsets = [0, 3, 0], sizes = [1, 29, 3], strides = [1, 1, 1]} : vector<5x32x3xbf16> to vector<1x29x3xbf16>
      %49 = vector.shape_cast %48 : vector<1x29x3xbf16> to vector<29x3xbf16>
      %cst_22 = arith.constant dense<0.000000e+00> : vector<29x128xf32>
      %50 = tpu.matmul %49, %47, %cst_22 {dimension_numbers = #tpu.dot_dimension_numbers<[1], [0], [0], [1], [0, 0, 1, 1], [], []>} : vector<29x3xbf16>, vector<3x128xbf16>, vector<29x128xf32> -> vector<29x128xf32>
      %51 = arith.addf %41, %50 : vector<29x128xf32>
      %52 = vector.extract_strided_slice %13 {offsets = [1, 3, 0], sizes = [1, 29, 3], strides = [1, 1, 1]} : vector<5x32x3xbf16> to vector<1x29x3xbf16>
      %53 = vector.shape_cast %52 : vector<1x29x3xbf16> to vector<29x3xbf16>
      %cst_23 = arith.constant dense<0.000000e+00> : vector<29x128xf32>
      %54 = tpu.matmul %53, %47, %cst_23 {dimension_numbers = #tpu.dot_dimension_numbers<[1], [0], [0], [1], [0, 0, 1, 1], [], []>} : vector<29x3xbf16>, vector<3x128xbf16>, vector<29x128xf32> -> vector<29x128xf32>
      %55 = arith.addf %45, %54 : vector<29x128xf32>
      %c4 = arith.constant 4 : index
      %c0_24 = arith.constant 0 : index
      %c0_25 = arith.constant 0 : index
      %56 = vector.load %arg2[%c4, %c0_24, %c0_25] : memref<16x3x128xbf16, #tpu.memory_space<vmem>>, vector<1x3x128xbf16>
      %57 = vector.shape_cast %56 : vector<1x3x128xbf16> to vector<3x128xbf16>
      %58 = vector.extract_strided_slice %13 {offsets = [1, 0, 0], sizes = [1, 29, 3], strides = [1, 1, 1]} : vector<5x32x3xbf16> to vector<1x29x3xbf16>
      %59 = vector.shape_cast %58 : vector<1x29x3xbf16> to vector<29x3xbf16>
      %cst_26 = arith.constant dense<0.000000e+00> : vector<29x128xf32>
      %60 = tpu.matmul %59, %57, %cst_26 {dimension_numbers = #tpu.dot_dimension_numbers<[1], [0], [0], [1], [0, 0, 1, 1], [], []>} : vector<29x3xbf16>, vector<3x128xbf16>, vector<29x128xf32> -> vector<29x128xf32>
      %61 = arith.addf %51, %60 : vector<29x128xf32>
      %62 = vector.extract_strided_slice %13 {offsets = [2, 0, 0], sizes = [1, 29, 3], strides = [1, 1, 1]} : vector<5x32x3xbf16> to vector<1x29x3xbf16>
      %63 = vector.shape_cast %62 : vector<1x29x3xbf16> to vector<29x3xbf16>
      %cst_27 = arith.constant dense<0.000000e+00> : vector<29x128xf32>
      %64 = tpu.matmul %63, %57, %cst_27 {dimension_numbers = #tpu.dot_dimension_numbers<[1], [0], [0], [1], [0, 0, 1, 1], [], []>} : vector<29x3xbf16>, vector<3x128xbf16>, vector<29x128xf32> -> vector<29x128xf32>
      %65 = arith.addf %55, %64 : vector<29x128xf32>
      %c5 = arith.constant 5 : index
      %c0_28 = arith.constant 0 : index
      %c0_29 = arith.constant 0 : index
      %66 = vector.load %arg2[%c5, %c0_28, %c0_29] : memref<16x3x128xbf16, #tpu.memory_space<vmem>>, vector<1x3x128xbf16>
      %67 = vector.shape_cast %66 : vector<1x3x128xbf16> to vector<3x128xbf16>
      %68 = vector.extract_strided_slice %13 {offsets = [1, 1, 0], sizes = [1, 29, 3], strides = [1, 1, 1]} : vector<5x32x3xbf16> to vector<1x29x3xbf16>
      %69 = vector.shape_cast %68 : vector<1x29x3xbf16> to vector<29x3xbf16>
      %cst_30 = arith.constant dense<0.000000e+00> : vector<29x128xf32>
      %70 = tpu.matmul %69, %67, %cst_30 {dimension_numbers = #tpu.dot_dimension_numbers<[1], [0], [0], [1], [0, 0, 1, 1], [], []>} : vector<29x3xbf16>, vector<3x128xbf16>, vector<29x128xf32> -> vector<29x128xf32>
      %71 = arith.addf %61, %70 : vector<29x128xf32>
      %72 = vector.extract_strided_slice %13 {offsets = [2, 1, 0], sizes = [1, 29, 3], strides = [1, 1, 1]} : vector<5x32x3xbf16> to vector<1x29x3xbf16>
      %73 = vector.shape_cast %72 : vector<1x29x3xbf16> to vector<29x3xbf16>
      %cst_31 = arith.constant dense<0.000000e+00> : vector<29x128xf32>
      %74 = tpu.matmul %73, %67, %cst_31 {dimension_numbers = #tpu.dot_dimension_numbers<[1], [0], [0], [1], [0, 0, 1, 1], [], []>} : vector<29x3xbf16>, vector<3x128xbf16>, vector<29x128xf32> -> vector<29x128xf32>
      %75 = arith.addf %65, %74 : vector<29x128xf32>
      %c6 = arith.constant 6 : index
      %c0_32 = arith.constant 0 : index
      %c0_33 = arith.constant 0 : index
      %76 = vector.load %arg2[%c6, %c0_32, %c0_33] : memref<16x3x128xbf16, #tpu.memory_space<vmem>>, vector<1x3x128xbf16>
      %77 = vector.shape_cast %76 : vector<1x3x128xbf16> to vector<3x128xbf16>
      %78 = vector.extract_strided_slice %13 {offsets = [1, 2, 0], sizes = [1, 29, 3], strides = [1, 1, 1]} : vector<5x32x3xbf16> to vector<1x29x3xbf16>
      %79 = vector.shape_cast %78 : vector<1x29x3xbf16> to vector<29x3xbf16>
      %cst_34 = arith.constant dense<0.000000e+00> : vector<29x128xf32>
      %80 = tpu.matmul %79, %77, %cst_34 {dimension_numbers = #tpu.dot_dimension_numbers<[1], [0], [0], [1], [0, 0, 1, 1], [], []>} : vector<29x3xbf16>, vector<3x128xbf16>, vector<29x128xf32> -> vector<29x128xf32>
      %81 = arith.addf %71, %80 : vector<29x128xf32>
      %82 = vector.extract_strided_slice %13 {offsets = [2, 2, 0], sizes = [1, 29, 3], strides = [1, 1, 1]} : vector<5x32x3xbf16> to vector<1x29x3xbf16>
      %83 = vector.shape_cast %82 : vector<1x29x3xbf16> to vector<29x3xbf16>
      %cst_35 = arith.constant dense<0.000000e+00> : vector<29x128xf32>
      %84 = tpu.matmul %83, %77, %cst_35 {dimension_numbers = #tpu.dot_dimension_numbers<[1], [0], [0], [1], [0, 0, 1, 1], [], []>} : vector<29x3xbf16>, vector<3x128xbf16>, vector<29x128xf32> -> vector<29x128xf32>
      %85 = arith.addf %75, %84 : vector<29x128xf32>
      %c7 = arith.constant 7 : index
      %c0_36 = arith.constant 0 : index
      %c0_37 = arith.constant 0 : index
      %86 = vector.load %arg2[%c7, %c0_36, %c0_37] : memref<16x3x128xbf16, #tpu.memory_space<vmem>>, vector<1x3x128xbf16>
      %87 = vector.shape_cast %86 : vector<1x3x128xbf16> to vector<3x128xbf16>
      %88 = vector.extract_strided_slice %13 {offsets = [1, 3, 0], sizes = [1, 29, 3], strides = [1, 1, 1]} : vector<5x32x3xbf16> to vector<1x29x3xbf16>
      %89 = vector.shape_cast %88 : vector<1x29x3xbf16> to vector<29x3xbf16>
      %cst_38 = arith.constant dense<0.000000e+00> : vector<29x128xf32>
      %90 = tpu.matmul %89, %87, %cst_38 {dimension_numbers = #tpu.dot_dimension_numbers<[1], [0], [0], [1], [0, 0, 1, 1], [], []>} : vector<29x3xbf16>, vector<3x128xbf16>, vector<29x128xf32> -> vector<29x128xf32>
      %91 = arith.addf %81, %90 : vector<29x128xf32>
      %92 = vector.extract_strided_slice %13 {offsets = [2, 3, 0], sizes = [1, 29, 3], strides = [1, 1, 1]} : vector<5x32x3xbf16> to vector<1x29x3xbf16>
      %93 = vector.shape_cast %92 : vector<1x29x3xbf16> to vector<29x3xbf16>
      %cst_39 = arith.constant dense<0.000000e+00> : vector<29x128xf32>
      %94 = tpu.matmul %93, %87, %cst_39 {dimension_numbers = #tpu.dot_dimension_numbers<[1], [0], [0], [1], [0, 0, 1, 1], [], []>} : vector<29x3xbf16>, vector<3x128xbf16>, vector<29x128xf32> -> vector<29x128xf32>
      %95 = arith.addf %85, %94 : vector<29x128xf32>
      %c8 = arith.constant 8 : index
      %c0_40 = arith.constant 0 : index
      %c0_41 = arith.constant 0 : index
      %96 = vector.load %arg2[%c8, %c0_40, %c0_41] : memref<16x3x128xbf16, #tpu.memory_space<vmem>>, vector<1x3x128xbf16>
      %97 = vector.shape_cast %96 : vector<1x3x128xbf16> to vector<3x128xbf16>
      %98 = vector.extract_strided_slice %13 {offsets = [2, 0, 0], sizes = [1, 29, 3], strides = [1, 1, 1]} : vector<5x32x3xbf16> to vector<1x29x3xbf16>
      %99 = vector.shape_cast %98 : vector<1x29x3xbf16> to vector<29x3xbf16>
      %cst_42 = arith.constant dense<0.000000e+00> : vector<29x128xf32>
      %100 = tpu.matmul %99, %97, %cst_42 {dimension_numbers = #tpu.dot_dimension_numbers<[1], [0], [0], [1], [0, 0, 1, 1], [], []>} : vector<29x3xbf16>, vector<3x128xbf16>, vector<29x128xf32> -> vector<29x128xf32>
      %101 = arith.addf %91, %100 : vector<29x128xf32>
      %102 = vector.extract_strided_slice %13 {offsets = [3, 0, 0], sizes = [1, 29, 3], strides = [1, 1, 1]} : vector<5x32x3xbf16> to vector<1x29x3xbf16>
      %103 = vector.shape_cast %102 : vector<1x29x3xbf16> to vector<29x3xbf16>
      %cst_43 = arith.constant dense<0.000000e+00> : vector<29x128xf32>
      %104 = tpu.matmul %103, %97, %cst_43 {dimension_numbers = #tpu.dot_dimension_numbers<[1], [0], [0], [1], [0, 0, 1, 1], [], []>} : vector<29x3xbf16>, vector<3x128xbf16>, vector<29x128xf32> -> vector<29x128xf32>
      %105 = arith.addf %95, %104 : vector<29x128xf32>
      %c9 = arith.constant 9 : index
      %c0_44 = arith.constant 0 : index
      %c0_45 = arith.constant 0 : index
      %106 = vector.load %arg2[%c9, %c0_44, %c0_45] : memref<16x3x128xbf16, #tpu.memory_space<vmem>>, vector<1x3x128xbf16>
      %107 = vector.shape_cast %106 : vector<1x3x128xbf16> to vector<3x128xbf16>
      %108 = vector.extract_strided_slice %13 {offsets = [2, 1, 0], sizes = [1, 29, 3], strides = [1, 1, 1]} : vector<5x32x3xbf16> to vector<1x29x3xbf16>
      %109 = vector.shape_cast %108 : vector<1x29x3xbf16> to vector<29x3xbf16>
      %cst_46 = arith.constant dense<0.000000e+00> : vector<29x128xf32>
      %110 = tpu.matmul %109, %107, %cst_46 {dimension_numbers = #tpu.dot_dimension_numbers<[1], [0], [0], [1], [0, 0, 1, 1], [], []>} : vector<29x3xbf16>, vector<3x128xbf16>, vector<29x128xf32> -> vector<29x128xf32>
      %111 = arith.addf %101, %110 : vector<29x128xf32>
      %112 = vector.extract_strided_slice %13 {offsets = [3, 1, 0], sizes = [1, 29, 3], strides = [1, 1, 1]} : vector<5x32x3xbf16> to vector<1x29x3xbf16>
      %113 = vector.shape_cast %112 : vector<1x29x3xbf16> to vector<29x3xbf16>
      %cst_47 = arith.constant dense<0.000000e+00> : vector<29x128xf32>
      %114 = tpu.matmul %113, %107, %cst_47 {dimension_numbers = #tpu.dot_dimension_numbers<[1], [0], [0], [1], [0, 0, 1, 1], [], []>} : vector<29x3xbf16>, vector<3x128xbf16>, vector<29x128xf32> -> vector<29x128xf32>
      %115 = arith.addf %105, %114 : vector<29x128xf32>
      %c10 = arith.constant 10 : index
      %c0_48 = arith.constant 0 : index
      %c0_49 = arith.constant 0 : index
      %116 = vector.load %arg2[%c10, %c0_48, %c0_49] : memref<16x3x128xbf16, #tpu.memory_space<vmem>>, vector<1x3x128xbf16>
      %117 = vector.shape_cast %116 : vector<1x3x128xbf16> to vector<3x128xbf16>
      %118 = vector.extract_strided_slice %13 {offsets = [2, 2, 0], sizes = [1, 29, 3], strides = [1, 1, 1]} : vector<5x32x3xbf16> to vector<1x29x3xbf16>
      %119 = vector.shape_cast %118 : vector<1x29x3xbf16> to vector<29x3xbf16>
      %cst_50 = arith.constant dense<0.000000e+00> : vector<29x128xf32>
      %120 = tpu.matmul %119, %117, %cst_50 {dimension_numbers = #tpu.dot_dimension_numbers<[1], [0], [0], [1], [0, 0, 1, 1], [], []>} : vector<29x3xbf16>, vector<3x128xbf16>, vector<29x128xf32> -> vector<29x128xf32>
      %121 = arith.addf %111, %120 : vector<29x128xf32>
      %122 = vector.extract_strided_slice %13 {offsets = [3, 2, 0], sizes = [1, 29, 3], strides = [1, 1, 1]} : vector<5x32x3xbf16> to vector<1x29x3xbf16>
      %123 = vector.shape_cast %122 : vector<1x29x3xbf16> to vector<29x3xbf16>
      %cst_51 = arith.constant dense<0.000000e+00> : vector<29x128xf32>
      %124 = tpu.matmul %123, %117, %cst_51 {dimension_numbers = #tpu.dot_dimension_numbers<[1], [0], [0], [1], [0, 0, 1, 1], [], []>} : vector<29x3xbf16>, vector<3x128xbf16>, vector<29x128xf32> -> vector<29x128xf32>
      %125 = arith.addf %115, %124 : vector<29x128xf32>
      %c11 = arith.constant 11 : index
      %c0_52 = arith.constant 0 : index
      %c0_53 = arith.constant 0 : index
      %126 = vector.load %arg2[%c11, %c0_52, %c0_53] : memref<16x3x128xbf16, #tpu.memory_space<vmem>>, vector<1x3x128xbf16>
      %127 = vector.shape_cast %126 : vector<1x3x128xbf16> to vector<3x128xbf16>
      %128 = vector.extract_strided_slice %13 {offsets = [2, 3, 0], sizes = [1, 29, 3], strides = [1, 1, 1]} : vector<5x32x3xbf16> to vector<1x29x3xbf16>
      %129 = vector.shape_cast %128 : vector<1x29x3xbf16> to vector<29x3xbf16>
      %cst_54 = arith.constant dense<0.000000e+00> : vector<29x128xf32>
      %130 = tpu.matmul %129, %127, %cst_54 {dimension_numbers = #tpu.dot_dimension_numbers<[1], [0], [0], [1], [0, 0, 1, 1], [], []>} : vector<29x3xbf16>, vector<3x128xbf16>, vector<29x128xf32> -> vector<29x128xf32>
      %131 = arith.addf %121, %130 : vector<29x128xf32>
      %132 = vector.extract_strided_slice %13 {offsets = [3, 3, 0], sizes = [1, 29, 3], strides = [1, 1, 1]} : vector<5x32x3xbf16> to vector<1x29x3xbf16>
      %133 = vector.shape_cast %132 : vector<1x29x3xbf16> to vector<29x3xbf16>
      %cst_55 = arith.constant dense<0.000000e+00> : vector<29x128xf32>
      %134 = tpu.matmul %133, %127, %cst_55 {dimension_numbers = #tpu.dot_dimension_numbers<[1], [0], [0], [1], [0, 0, 1, 1], [], []>} : vector<29x3xbf16>, vector<3x128xbf16>, vector<29x128xf32> -> vector<29x128xf32>
      %135 = arith.addf %125, %134 : vector<29x128xf32>
      %c12 = arith.constant 12 : index
      %c0_56 = arith.constant 0 : index
      %c0_57 = arith.constant 0 : index
      %136 = vector.load %arg2[%c12, %c0_56, %c0_57] : memref<16x3x128xbf16, #tpu.memory_space<vmem>>, vector<1x3x128xbf16>
      %137 = vector.shape_cast %136 : vector<1x3x128xbf16> to vector<3x128xbf16>
      %138 = vector.extract_strided_slice %13 {offsets = [3, 0, 0], sizes = [1, 29, 3], strides = [1, 1, 1]} : vector<5x32x3xbf16> to vector<1x29x3xbf16>
      %139 = vector.shape_cast %138 : vector<1x29x3xbf16> to vector<29x3xbf16>
      %cst_58 = arith.constant dense<0.000000e+00> : vector<29x128xf32>
      %140 = tpu.matmul %139, %137, %cst_58 {dimension_numbers = #tpu.dot_dimension_numbers<[1], [0], [0], [1], [0, 0, 1, 1], [], []>} : vector<29x3xbf16>, vector<3x128xbf16>, vector<29x128xf32> -> vector<29x128xf32>
      %141 = arith.addf %131, %140 : vector<29x128xf32>
      %142 = vector.extract_strided_slice %13 {offsets = [4, 0, 0], sizes = [1, 29, 3], strides = [1, 1, 1]} : vector<5x32x3xbf16> to vector<1x29x3xbf16>
      %143 = vector.shape_cast %142 : vector<1x29x3xbf16> to vector<29x3xbf16>
      %cst_59 = arith.constant dense<0.000000e+00> : vector<29x128xf32>
      %144 = tpu.matmul %143, %137, %cst_59 {dimension_numbers = #tpu.dot_dimension_numbers<[1], [0], [0], [1], [0, 0, 1, 1], [], []>} : vector<29x3xbf16>, vector<3x128xbf16>, vector<29x128xf32> -> vector<29x128xf32>
      %145 = arith.addf %135, %144 : vector<29x128xf32>
      %c13 = arith.constant 13 : index
      %c0_60 = arith.constant 0 : index
      %c0_61 = arith.constant 0 : index
      %146 = vector.load %arg2[%c13, %c0_60, %c0_61] : memref<16x3x128xbf16, #tpu.memory_space<vmem>>, vector<1x3x128xbf16>
      %147 = vector.shape_cast %146 : vector<1x3x128xbf16> to vector<3x128xbf16>
      %148 = vector.extract_strided_slice %13 {offsets = [3, 1, 0], sizes = [1, 29, 3], strides = [1, 1, 1]} : vector<5x32x3xbf16> to vector<1x29x3xbf16>
      %149 = vector.shape_cast %148 : vector<1x29x3xbf16> to vector<29x3xbf16>
      %cst_62 = arith.constant dense<0.000000e+00> : vector<29x128xf32>
      %150 = tpu.matmul %149, %147, %cst_62 {dimension_numbers = #tpu.dot_dimension_numbers<[1], [0], [0], [1], [0, 0, 1, 1], [], []>} : vector<29x3xbf16>, vector<3x128xbf16>, vector<29x128xf32> -> vector<29x128xf32>
      %151 = arith.addf %141, %150 : vector<29x128xf32>
      %152 = vector.extract_strided_slice %13 {offsets = [4, 1, 0], sizes = [1, 29, 3], strides = [1, 1, 1]} : vector<5x32x3xbf16> to vector<1x29x3xbf16>
      %153 = vector.shape_cast %152 : vector<1x29x3xbf16> to vector<29x3xbf16>
      %cst_63 = arith.constant dense<0.000000e+00> : vector<29x128xf32>
      %154 = tpu.matmul %153, %147, %cst_63 {dimension_numbers = #tpu.dot_dimension_numbers<[1], [0], [0], [1], [0, 0, 1, 1], [], []>} : vector<29x3xbf16>, vector<3x128xbf16>, vector<29x128xf32> -> vector<29x128xf32>
      %155 = arith.addf %145, %154 : vector<29x128xf32>
      %c14 = arith.constant 14 : index
      %c0_64 = arith.constant 0 : index
      %c0_65 = arith.constant 0 : index
      %156 = vector.load %arg2[%c14, %c0_64, %c0_65] : memref<16x3x128xbf16, #tpu.memory_space<vmem>>, vector<1x3x128xbf16>
      %157 = vector.shape_cast %156 : vector<1x3x128xbf16> to vector<3x128xbf16>
      %158 = vector.extract_strided_slice %13 {offsets = [3, 2, 0], sizes = [1, 29, 3], strides = [1, 1, 1]} : vector<5x32x3xbf16> to vector<1x29x3xbf16>
      %159 = vector.shape_cast %158 : vector<1x29x3xbf16> to vector<29x3xbf16>
      %cst_66 = arith.constant dense<0.000000e+00> : vector<29x128xf32>
      %160 = tpu.matmul %159, %157, %cst_66 {dimension_numbers = #tpu.dot_dimension_numbers<[1], [0], [0], [1], [0, 0, 1, 1], [], []>} : vector<29x3xbf16>, vector<3x128xbf16>, vector<29x128xf32> -> vector<29x128xf32>
      %161 = arith.addf %151, %160 : vector<29x128xf32>
      %162 = vector.extract_strided_slice %13 {offsets = [4, 2, 0], sizes = [1, 29, 3], strides = [1, 1, 1]} : vector<5x32x3xbf16> to vector<1x29x3xbf16>
      %163 = vector.shape_cast %162 : vector<1x29x3xbf16> to vector<29x3xbf16>
      %cst_67 = arith.constant dense<0.000000e+00> : vector<29x128xf32>
      %164 = tpu.matmul %163, %157, %cst_67 {dimension_numbers = #tpu.dot_dimension_numbers<[1], [0], [0], [1], [0, 0, 1, 1], [], []>} : vector<29x3xbf16>, vector<3x128xbf16>, vector<29x128xf32> -> vector<29x128xf32>
      %165 = arith.addf %155, %164 : vector<29x128xf32>
      %c15 = arith.constant 15 : index
      %c0_68 = arith.constant 0 : index
      %c0_69 = arith.constant 0 : index
      %166 = vector.load %arg2[%c15, %c0_68, %c0_69] : memref<16x3x128xbf16, #tpu.memory_space<vmem>>, vector<1x3x128xbf16>
      %167 = vector.shape_cast %166 : vector<1x3x128xbf16> to vector<3x128xbf16>
      %168 = vector.extract_strided_slice %13 {offsets = [3, 3, 0], sizes = [1, 29, 3], strides = [1, 1, 1]} : vector<5x32x3xbf16> to vector<1x29x3xbf16>
      %169 = vector.shape_cast %168 : vector<1x29x3xbf16> to vector<29x3xbf16>
      %cst_70 = arith.constant dense<0.000000e+00> : vector<29x128xf32>
      %170 = tpu.matmul %169, %167, %cst_70 {dimension_numbers = #tpu.dot_dimension_numbers<[1], [0], [0], [1], [0, 0, 1, 1], [], []>} : vector<29x3xbf16>, vector<3x128xbf16>, vector<29x128xf32> -> vector<29x128xf32>
      %171 = arith.addf %161, %170 : vector<29x128xf32>
      %172 = vector.extract_strided_slice %13 {offsets = [4, 3, 0], sizes = [1, 29, 3], strides = [1, 1, 1]} : vector<5x32x3xbf16> to vector<1x29x3xbf16>
      %173 = vector.shape_cast %172 : vector<1x29x3xbf16> to vector<29x3xbf16>
      %cst_71 = arith.constant dense<0.000000e+00> : vector<29x128xf32>
      %174 = tpu.matmul %173, %167, %cst_71 {dimension_numbers = #tpu.dot_dimension_numbers<[1], [0], [0], [1], [0, 0, 1, 1], [], []>} : vector<29x3xbf16>, vector<3x128xbf16>, vector<29x128xf32> -> vector<29x128xf32>
      %175 = arith.addf %165, %174 : vector<29x128xf32>
      %176 = vector.broadcast %0 : vector<1x128xf32> to vector<29x128xf32>
      %177 = arith.addf %171, %176 : vector<29x128xf32>
      %cst_72 = arith.constant 0.000000e+00 : f32
      %178 = vector.broadcast %cst_72 : f32 to vector<29x128xf32>
      %179 = arith.maximumf %177, %178 : vector<29x128xf32>
      %180 = vector.broadcast %0 : vector<1x128xf32> to vector<29x128xf32>
      %181 = arith.addf %175, %180 : vector<29x128xf32>
      %cst_73 = arith.constant 0.000000e+00 : f32
      %182 = vector.broadcast %cst_73 : f32 to vector<29x128xf32>
      %183 = arith.maximumf %181, %182 : vector<29x128xf32>
      %184 = arith.maximumf %179, %183 : vector<29x128xf32>
      %185 = vector.extract_strided_slice %184 {offsets = [0, 0], sizes = [28, 128], strides = [1, 1]} : vector<29x128xf32> to vector<28x128xf32>
      %186 = vector.extract_strided_slice %184 {offsets = [1, 0], sizes = [28, 128], strides = [1, 1]} : vector<29x128xf32> to vector<28x128xf32>
      %187 = arith.maximumf %185, %186 : vector<28x128xf32>
      %cst_74 = arith.constant dense<0.000000e+00> : vector<14x128xf32>
      %188 = tpu.matmul %7, %187, %cst_74 {dimension_numbers = #tpu.dot_dimension_numbers<[1], [0], [0], [1], [0, 0, 1, 1], [], []>} : vector<14x28xf32>, vector<28x128xf32>, vector<14x128xf32> -> vector<14x128xf32>
      %189 = vector.shape_cast %188 : vector<14x128xf32> to vector<1x14x128xf32>
      %c0_75 = arith.constant 0 : index
      %190 = arith.index_cast %arg5 : i32 to index
      %c0_76 = arith.constant 0 : index
      %c0_77 = arith.constant 0 : index
      %191 = vector.load %arg4[%c0_75, %190, %c0_76, %c0_77] : memref<1x14x14x128xf32, #tpu.memory_space<vmem>>, vector<1x1x14x128xf32>
      %192 = vector.shape_cast %191 : vector<1x1x14x128xf32> to vector<1x14x128xf32>
      %193 = vector.shape_cast %189 : vector<1x14x128xf32> to vector<1x1x14x128xf32>
      tpu.vector_store %arg4[%c0_75, %190, %c0_76, %c0_77], %193 {strides = array<i32>} : memref<1x14x14x128xf32, #tpu.memory_space<vmem>>, vector<1x1x14x128xf32>,
    }
    %c14_i32_1 = arith.constant 14 : i32
    return
  }
  func.func @transform_0(%arg0: i32) -> (i32, i32, i32, i32) {
    %c0_i32 = arith.constant 0 : i32
    %c0_i32_0 = arith.constant 0 : i32
    %c0_i32_1 = arith.constant 0 : i32
    %c0_i32_2 = arith.constant 0 : i32
    return %arg0, %c0_i32, %c0_i32_0, %c0_i32_1 : i32, i32, i32, i32
  }
  func.func @transform_1(%arg0: i32) -> (i32, i32, i32) {
    %c0_i32 = arith.constant 0 : i32
    %c0_i32_0 = arith.constant 0 : i32
    %c0_i32_1 = arith.constant 0 : i32
    %c0_i32_2 = arith.constant 0 : i32
    return %c0_i32, %c0_i32_0, %c0_i32_1 : i32, i32, i32
  }
  func.func @transform_2(%arg0: i32) -> (i32, i32) {
    %c0_i32 = arith.constant 0 : i32
    %c0_i32_0 = arith.constant 0 : i32
    %c0_i32_1 = arith.constant 0 : i32
    return %c0_i32, %c0_i32_0 : i32, i32
  }
  func.func @transform_3(%arg0: i32) -> (i32, i32, i32, i32) {
    %c0_i32 = arith.constant 0 : i32
    %c0_i32_0 = arith.constant 0 : i32
    %c0_i32_1 = arith.constant 0 : i32
    %c0_i32_2 = arith.constant 0 : i32
    return %arg0, %c0_i32, %c0_i32_0, %c0_i32_1 : i32, i32, i32, i32
  }
}

</mosaic_0001>

<llo_original>
// kernel: tpu_custom_call.1
$region0: #{tpu_custom_call.1}
  #allocation0 [shape = 'u32[]', space=smem, size = 0x4, offset = 0x4, fixed_abs, tag = 'smem constant byte address 0x4 - core index']
  #allocation1 [shape = 'u32[144,128]{1,0:T(1,128)}', space=vmem, size = 0x12000, scoped, tag = 'internal scratch']
  %s0 = inlined_call_operand.vmem [shape: f32[2,32,32,3], index: 0, kind: input, shape index: {}]
  %s1 = inlined_call_operand.vmem [shape: bf16[16,3,128], index: 1, kind: input, shape index: {}]
  %s2 = inlined_call_operand.vmem [shape: f32[1,128], index: 2, kind: input, shape index: {}]
  %s3 = inlined_call_operand.vmem [shape: f32[2,14,14,128], index: 3, kind: output, shape index: {}]
  %s4 = sld [smem:[#allocation0]]
  $region52: #{tpu_custom_call.1} parent=0
    _
  %s6 = ssub.s32 1, %s4
  %s7 = scalar_select 0, %s6, %s4
  loop: start=0, step=1, limit=4
  $region2: #{tpu_custom_call.1} parent=0 // loop_pre_header
    _
  $region3: #{tpu_custom_call.1} parent=0 // loop_header
    %s9 = sphi 0, %s13
    %p10 = scmp.ge.s32.totalorder %s9, 4
    %s19 = sphi 0, %s21
    %s22 = sphi 0, %s19
    %s23 = sphi 0, %s22
    %s39 = sphi 0, %s23
    %s43 = sphi 0, %s43
    %s45 = sphi 0, %s43
    %s46 = sphi 0, %s45
    %s60 = sphi 0, %s46
    %s64 = sphi 0, %s64
    %s66 = sphi 0, %s64
    %s67 = sphi 0, %s66
    %s81 = sphi 0, %s67
    %s87 = sphi 0, %s89
    %s90 = sphi 0, %s87
    %s91 = sphi 0, %s90
    %s107 = sphi 0, %s91
  $region4: #{tpu_custom_call.1} parent=0 // loop_header_branch
    %12 = sbr.rel (%p10) target = $region8
  $region5: #{tpu_custom_call.1} parent=0 // loop_body
    %s14 = ssub.s32 %s9, 1
    %s15 = ssub.s32 %s9, 2
    %s16 = sadd.s32 %s9, 1
    %s17 = ssub.s32 %s9, %s16
    %p18 = scmp.eq.s32.totalorder %s17, 0
    %s20 = sadd.s32 %s19, 1
    %s21 = scalar_select %p18, %s19, %s20
    %p24 = pneg %p18
    %p25 = scmp.eq.s32.totalorder %s9, 1
    %p26 = por %p24, %p25
    %p27 = scmp.ne.s32.totalorder %s19, %s22
    %p28 = scmp.eq.s32.totalorder %s9, 0
    %p29 = por %p27, %p28
    %p30 = scmp.ne.s32.totalorder %s19, %s22
    %p31 = scmp.eq.s32.totalorder %s14, 1
    %p32 = por %p30, %p31
    %p33 = scmp.ne.s32.totalorder %s22, %s23
    %p34 = scmp.eq.s32.totalorder %s14, 0
    %p35 = por %p33, %p34
    %p36 = scmp.ne.s32.totalorder %s22, %s23
    %p37 = scmp.eq.s32.totalorder %s15, 1
    %p38 = por %p36, %p37
    %p40 = scmp.ne.s32.totalorder %s23, %s39
    %p41 = scmp.eq.s32.totalorder %s15, 0
    %p42 = por %p40, %p41
    %s44 = sadd.s32 %s43, 1
    %p47 = scmp.eq.s32.totalorder %s9, 1
    %p48 = scmp.ne.s32.totalorder %s43, %s45
    %p49 = scmp.eq.s32.totalorder %s9, 0
    %p50 = por %p48, %p49
    %p51 = scmp.ne.s32.totalorder %s43, %s45
    %p52 = scmp.eq.s32.totalorder %s14, 1
    %p53 = por %p51, %p52
    %p54 = scmp.ne.s32.totalorder %s45, %s46
    %p55 = scmp.eq.s32.totalorder %s14, 0
    %p56 = por %p54, %p55
    %p57 = scmp.ne.s32.totalorder %s45, %s46
    %p58 = scmp.eq.s32.totalorder %s15, 1
    %p59 = por %p57, %p58
    %p61 = scmp.ne.s32.totalorder %s46, %s60
    %p62 = scmp.eq.s32.totalorder %s15, 0
    %p63 = por %p61, %p62
    %s65 = sadd.s32 %s64, 1
    %p68 = scmp.eq.s32.totalorder %s9, 1
    %p69 = scmp.ne.s32.totalorder %s64, %s66
    %p70 = scmp.eq.s32.totalorder %s9, 0
    %p71 = por %p69, %p70
    %p72 = scmp.ne.s32.totalorder %s64, %s66
    %p73 = scmp.eq.s32.totalorder %s14, 1
    %p74 = por %p72, %p73
    %p75 = scmp.ne.s32.totalorder %s66, %s67
    %p76 = scmp.eq.s32.totalorder %s14, 0
    %p77 = por %p75, %p76
    %p78 = scmp.ne.s32.totalorder %s66, %s67
    %p79 = scmp.eq.s32.totalorder %s15, 1
    %p80 = por %p78, %p79
    %p82 = scmp.ne.s32.totalorder %s67, %s81
    %p83 = scmp.eq.s32.totalorder %s15, 0
    %p84 = por %p82, %p83
    %s85 = ssub.s32 %s9, %s16
    %p86 = scmp.eq.s32.totalorder %s85, 0
    %s88 = sadd.s32 %s87, 1
    %s89 = scalar_select %p86, %s87, %s88
    %p92 = pneg %p86
    %p93 = scmp.eq.s32.totalorder %s9, 1
    %p94 = por %p92, %p93
    %p95 = scmp.ne.s32.totalorder %s87, %s90
    %p96 = scmp.eq.s32.totalorder %s9, 0
    %p97 = por %p95, %p96
    %p98 = scmp.ne.s32.totalorder %s87, %s90
    %p99 = scmp.eq.s32.totalorder %s14, 1
    %p100 = por %p98, %p99
    %p101 = scmp.ne.s32.totalorder %s90, %s91
    %p102 = scmp.eq.s32.totalorder %s14, 0
    %p103 = por %p101, %p102
    %p104 = scmp.ne.s32.totalorder %s90, %s91
    %p105 = scmp.eq.s32.totalorder %s15, 1
    %p106 = por %p104, %p105
    %p108 = scmp.ne.s32.totalorder %s91, %s107
    %p109 = scmp.eq.s32.totalorder %s15, 0
    %p110 = por %p108, %p109
    %p111 = scmp.le.s32.totalorder 1, %s9
    %p112 = scmp.lt.s32.totalorder %s9, 3
    %p113 = pnand %p111, %p112
    %p114 = pneg %p113
    // Predicated region
    $region9: #{tpu_custom_call.1} parent=5 // pred_check
      _
    $region10: #{tpu_custom_call.1} parent=5 // pred_check_branch
      %116 = sbr.rel (%p113) target = $region12
    $region11: #{tpu_custom_call.1} parent=5 // pred_region
      %s117 = ssub.s32 %s9, 1
      // Predicated region
      $region13: #{tpu_custom_call.1} parent=11 // pred_check
        %p118 = pneg %p56
      $region14: #{tpu_custom_call.1} parent=11 // pred_check_branch
        %120 = sbr.rel (%p118) target = $region16
      $region15: #{tpu_custom_call.1} parent=11 // pred_region
        _
      $region16: #{tpu_custom_call.1} parent=11 // pred_fallthru
        _
      // Predicated region
      $region17: #{tpu_custom_call.1} parent=11 // pred_check
        %p121 = pneg %p77
      $region18: #{tpu_custom_call.1} parent=11 // pred_check_branch
        %123 = sbr.rel (%p121) target = $region20
      $region19: #{tpu_custom_call.1} parent=11 // pred_region
        _
      $region20: #{tpu_custom_call.1} parent=11 // pred_fallthru
        _
    $region12: #{tpu_custom_call.1} parent=5 // pred_fallthru
      _
    %p124 = scmp.lt.s32.totalorder %s9, 2
    // Predicated region
    $region21: #{tpu_custom_call.1} parent=5 // pred_check
      %p125 = pneg %p124
    $region22: #{tpu_custom_call.1} parent=5 // pred_check_branch
      %127 = sbr.rel (%p125) target = $region24
    $region23: #{tpu_custom_call.1} parent=5 // pred_region
      // Predicated region
      $region25: #{tpu_custom_call.1} parent=23 // pred_check
        %p128 = pneg %p29
      $region26: #{tpu_custom_call.1} parent=23 // pred_check_branch
        %130 = sbr.rel (%p128) target = $region28
      $region27: #{tpu_custom_call.1} parent=23 // pred_region
        %p131 = scmp.lt.s32.totalorder %s9, 1
        %s132 = scalar_select %p131, %s9, 1
        %s133 = smul.addr %s132, 128
        %s134 = smul.addr %s133, 8
        %s135 = scalar_lea.vmem %s0, %s134
      $region28: #{tpu_custom_call.1} parent=23 // pred_fallthru
        _
    $region24: #{tpu_custom_call.1} parent=5 // pred_fallthru
      _
    %p136 = scmp.le.s32.totalorder 1, %s9
    %p137 = scmp.lt.s32.totalorder %s9, 3
    %p138 = pnand %p136, %p137
    %p139 = pneg %p138
    // Predicated region
    $region29: #{tpu_custom_call.1} parent=5 // pred_check
      _
    $region30: #{tpu_custom_call.1} parent=5 // pred_check_branch
      %141 = sbr.rel (%p138) target = $region32
    $region31: #{tpu_custom_call.1} parent=5 // pred_region
      %s142 = ssub.s32 %s9, 1
      %p143 = scmp.lt.s32.totalorder %s14, 1
      %s144 = scalar_select %p143, %s14, 1
      %s145 = smul.addr %s144, 128
      %s146 = smul.addr %s145, 8
      %s147 = scalar_lea.vmem %s0, %s146
      %p148 = pneg %p35
      %p149 = pneg %p32
      %p150 = pneg %p56
      %p151 = pneg %p53
      %p152 = pneg %p77
      %p153 = pneg %p74
      %p154 = pneg %p103
      %p155 = pneg %p100
      %p156 = scmp.lt.s32.totalorder %s14, 1
      %s157 = scalar_select %p156, %s14, 1
      %s158 = smul.addr %s157, 28
      %s159 = smul.addr %s158, 8
      %s160 = scalar_lea.vmem %s3, %s159
      %p161 = scmp.lt.s32.totalorder %s14, 1
      %s162 = scalar_select %p161, %s14, 1
      %s163 = smul.addr %s162, 128
      %s164 = smul.addr %s163, 8
      %s165 = scalar_lea.vmem %s0, %s164
      %p166 = scmp.lt.s32.totalorder %s14, 1
      %s167 = scalar_select %p166, %s14, 1
      %s168 = smul.addr %s167, 28
      %s169 = smul.addr %s168, 8
      %s170 = scalar_lea.vmem %s3, %s169
      %v172 = vld [vmem:[%s2] sm:$0x1]
      %v173 = vlaneseq
      %v174 = vshrl.u32 %v173, 7
      %v175 = vadd.s32 %v174, 8
      %v176 = vlaneseq
      %v177 = vand.u32 %v176, 127
      %v178 = vmul.u32 %v174, 2
      %v179 = vmul.u32 %v175, 2
      %vm180 = vcmp.eq.s32.totalorder %v177, %v178
      %vm181 = vcmp.eq.s32.totalorder %v177, %v179
      %v182 = vsel %vm180, 1, 0
      %v183 = vsel %vm181, 1, 0
      %v184 = vcvt.s32.f32 %v182
      %v185 = vcvt.s32.f32 %v183
      loop: start=0, step=1, limit=14
      $region33: #{tpu_custom_call.1} parent=31 // loop_pre_header
        _
      $region34: #{tpu_custom_call.1} parent=31 // loop_header
        %s187 = sphi 0, %s191
        %p188 = scmp.ge.s32.totalorder %s187, 14
      $region35: #{tpu_custom_call.1} parent=31 // loop_header_branch
        %190 = sbr.rel (%p188) target = $region39
      $region36: #{tpu_custom_call.1} parent=31 // loop_body
        %s192 = smul.u32 %s187, 2
        %s193 = smul.u32 %s192, 32
        %s194 = scalar_lea.vmem %s165, %s193
        %v195 = vld [vmem:[%s194] sm:$0xff]
        %v196 = vld [vmem:[%s194 + $0x8] sm:$0xff]
        %v197 = vld [vmem:[%s194 + $0x10] sm:$0xff]
        %v198 = vld [vmem:[%s194 + $0x18] sm:$0xff]
        %v199 = vld [vmem:[%s194 + $0x20] sm:$0xff]
        %v200 = vld [vmem:[%s194 + $0x28] sm:$0xff]
        %v201 = vld [vmem:[%s194 + $0x30] sm:$0xff]
        %v202 = vld [vmem:[%s194 + $0x38] sm:$0xff]
        %v203 = vld [vmem:[%s194 + $0x40] sm:$0xff]
        %v204 = vld [vmem:[%s194 + $0x48] sm:$0xff]
        %v205 = vld [vmem:[%s194 + $0x50] sm:$0xff]
        %v206 = vld [vmem:[%s194 + $0x58] sm:$0xff]
        %v207 = vld [vmem:[%s194 + $0x60] sm:$0xff]
        %v208 = vld [vmem:[%s194 + $0x68] sm:$0xff]
        %v209 = vld [vmem:[%s194 + $0x70] sm:$0xff]
        %v210 = vld [vmem:[%s194 + $0x78] sm:$0xff]
        %v211 = vld [vmem:[%s194 + $0x80] sm:$0xff]
        %v212 = vld [vmem:[%s194 + $0x88] sm:$0xff]
        %v213 = vld [vmem:[%s194 + $0x90] sm:$0xff]
        %v214 = vld [vmem:[%s194 + $0x98] sm:$0xff]
        %v215 = vpack.c.bf16 %v196, %v195
        %v216 = vpack.c.bf16 %v198, %v197
        %v217 = vpack.c.bf16 %v200, %v199
        %v218 = vpack.c.bf16 %v202, %v201
        %v219 = vpack.c.bf16 %v204, %v203
        %v220 = vpack.c.bf16 %v206, %v205
        %v221 = vpack.c.bf16 %v208, %v207
        %v222 = vpack.c.bf16 %v210, %v209
        %v223 = vpack.c.bf16 %v212, %v211
        %v224 = vpack.c.bf16 %v214, %v213
        %v225 = vld [vmem:[%s1] sm:$0x3]
        %s226 = scalar_lea.vmem %s1, 2
        %v227 = vld [vmem:[%s226] sm:$0x3]
        %vm228 = vsmask.f32 7424
        %v230 = vshrl.u32 %v215, 16
        %v232 = vshll.u32 %v215, 16
        %v234 = vrot.slane %v232, 1
        %v235 = vor.u32 %v230, %v234
        %v237 = vshll.u32 %v216, 16
        %v239 = vrot.slane %v237, 1
        %v240 = vsel %vm228, %v235, %v239
        %v241 = vshrl.u32 %v216, 16
        %v243 = vor.u32 %v241, %v239
        %vm244 = vcmask 23552
        %v246 = vsel %vm244, %v240, 0
        %v249 = vsel %vm244, %v243, 0
        %vm251 = vcmask 1040384
        %vm252 = vcmask 1041408
        %v253 = vsel %vm251, 4294967295, 65535
        %v254 = vsel %vm252, %v253, 0
        %v256 = vand.u32 %v227, %v254
        %258 = vmatprep.subr.bf16.mxu0 0
        %259 = vmatpush1.bf16.msra.mxu0 0
        %260 = vmatprep.subr.bf16.mxu0 0
        %261 = vmatpush1.bf16.msra.mxu0 0
        %262 = vmatprep.subr.bf16.mxu0 0
        %263 = vmatpush1.bf16.msra.mxu0 0
        %264 = vmatprep.subr.bf16.mxu0 0
        %265 = vmatpush1.bf16.msra.mxu0 0
        %266 = vmatprep.subr.bf16.mxu0 0
        %267 = vmatpush1.bf16.msra.mxu0 0
        %268 = vmatprep.subr.bf16.mxu0 0
        %269 = vmatpush1.bf16.msra.mxu0 0
        %270 = vmatprep.subr.bf16.mxu0 0
        %271 = vmatpush1.bf16.msra.mxu0 0
        %272 = vmatprep.subr.bf16.mxu0 0
        %273 = vmatpush1.bf16.msra.mxu0 %v256
        %274 = vmatprep.subr.bf16.mxu0 0
        %275 = vmatpush2.bf16.msra.mxu0 0
        %276 = vmatprep.subr.bf16.mxu0 0
        %277 = vmatpush2.bf16.msra.mxu0 0
        %278 = vmatprep.subr.bf16.mxu0 0
        %279 = vmatpush2.bf16.msra.mxu0 0
        %280 = vmatprep.subr.bf16.mxu0 0
        %281 = vmatpush2.bf16.msra.mxu0 0
        %282 = vmatprep.subr.bf16.mxu0 0
        %283 = vmatpush2.bf16.msra.mxu0 0
        %284 = vmatprep.subr.bf16.mxu0 0
        %285 = vmatpush2.bf16.msra.mxu0 0
        %286 = vmatprep.subr.bf16.mxu0 0
        %287 = vmatpush2.bf16.msra.mxu0 0
        %288 = vmatprep.subr.bf16.mxu0 0
        %289 = vmatpush2.bf16.msra.mxu0 0
        %290 = vmatprep.mubr.bf16.mxu0 0
        %291 = vmatmul.mubr.bf16.gmra.mxu0 %v246
        %v292 = vpop.f32.mrf.mxu0
        %v293 = vadd.f32 0.0, %v292
        %v294 = vpop.f32.mrf.mxu0
        %v295 = vpop.f32.mrf.mxu0
        %v296 = vadd.f32 0.0, %v295
        %v297 = vpop.f32.mrf.mxu0
        %298 = vmatprep.mubr.bf16.mxu0 0
        %299 = vmatmul.mubr.bf16.gmra.mxu0 %v249
        %v300 = vpop.f32.mrf.mxu0
        %v301 = vadd.f32 0.0, %v300
        %v302 = vpop.f32.mrf.mxu0
        %v303 = vpop.f32.mrf.mxu0
        %v304 = vadd.f32 0.0, %v303
        %v305 = vpop.f32.mrf.mxu0
        %306 = vdwg.mxu0
        %v307 = vsel %vm244, %v215, 0
        %v309 = vsel %vm244, %v216, 0
        %v312 = vand.u32 %v225, %v254
        %314 = vmatprep.subr.bf16.mxu0 0
        %315 = vmatpush1.bf16.msra.mxu0 0
        %316 = vmatprep.subr.bf16.mxu0 0
        %317 = vmatpush1.bf16.msra.mxu0 0
        %318 = vmatprep.subr.bf16.mxu0 0
        %319 = vmatpush1.bf16.msra.mxu0 0
        %320 = vmatprep.subr.bf16.mxu0 0
        %321 = vmatpush1.bf16.msra.mxu0 0
        %322 = vmatprep.subr.bf16.mxu0 0
        %323 = vmatpush1.bf16.msra.mxu0 0
        %324 = vmatprep.subr.bf16.mxu0 0
        %325 = vmatpush1.bf16.msra.mxu0 0
        %326 = vmatprep.subr.bf16.mxu0 0
        %327 = vmatpush1.bf16.msra.mxu0 0
        %328 = vmatprep.subr.bf16.mxu0 0
        %329 = vmatpush1.bf16.msra.mxu0 %v312
        %330 = vmatprep.subr.bf16.mxu0 0
        %331 = vmatpush2.bf16.msra.mxu0 0
        %332 = vmatprep.subr.bf16.mxu0 0
        %333 = vmatpush2.bf16.msra.mxu0 0
        %334 = vmatprep.subr.bf16.mxu0 0
        %335 = vmatpush2.bf16.msra.mxu0 0
        %336 = vmatprep.subr.bf16.mxu0 0
        %337 = vmatpush2.bf16.msra.mxu0 0
        %338 = vmatprep.subr.bf16.mxu0 0
        %339 = vmatpush2.bf16.msra.mxu0 0
        %340 = vmatprep.subr.bf16.mxu0 0
        %341 = vmatpush2.bf16.msra.mxu0 0
        %342 = vmatprep.subr.bf16.mxu0 0
        %343 = vmatpush2.bf16.msra.mxu0 0
        %344 = vmatprep.subr.bf16.mxu0 0
        %345 = vmatpush2.bf16.msra.mxu0 0
        %346 = vmatprep.mubr.bf16.mxu0 0
        %347 = vmatmul.mubr.bf16.gmra.mxu0 %v307
        %v348 = vpop.f32.mrf.mxu0
        %v349 = vadd.f32 %v293, %v348
        %v350 = vpop.f32.mrf.mxu0
        %v351 = vpop.f32.mrf.mxu0
        %v352 = vadd.f32 %v296, %v351
        %v353 = vpop.f32.mrf.mxu0
        %354 = vmatprep.mubr.bf16.mxu0 0
        %355 = vmatmul.mubr.bf16.gmra.mxu0 %v309
        %v356 = vpop.f32.mrf.mxu0
        %v357 = vadd.f32 %v301, %v356
        %v358 = vpop.f32.mrf.mxu0
        %v359 = vpop.f32.mrf.mxu0
        %v360 = vadd.f32 %v304, %v359
        %v361 = vpop.f32.mrf.mxu0
        %362 = vdwg.mxu0
        %v364 = vshrl.u32 %v217, 16
        %v366 = vshll.u32 %v217, 16
        %v368 = vrot.slane %v366, 1
        %v369 = vor.u32 %v364, %v368
        %v371 = vshll.u32 %v218, 16
        %v373 = vrot.slane %v371, 1
        %v374 = vsel %vm228, %v369, %v373
        %v375 = vshrl.u32 %v218, 16
        %v377 = vor.u32 %v375, %v373
        %v379 = vsel %vm244, %v374, 0
        %v382 = vsel %vm244, %v377, 0
        %384 = vmatprep.subr.bf16.mxu0 0
        %385 = vmatpush1.bf16.msra.mxu0 0
        %386 = vmatprep.subr.bf16.mxu0 0
        %387 = vmatpush1.bf16.msra.mxu0 0
        %388 = vmatprep.subr.bf16.mxu0 0
        %389 = vmatpush1.bf16.msra.mxu0 0
        %390 = vmatprep.subr.bf16.mxu0 0
        %391 = vmatpush1.bf16.msra.mxu0 0
        %392 = vmatprep.subr.bf16.mxu0 0
        %393 = vmatpush1.bf16.msra.mxu0 0
        %394 = vmatprep.subr.bf16.mxu0 0
        %395 = vmatpush1.bf16.msra.mxu0 0
        %396 = vmatprep.subr.bf16.mxu0 0
        %397 = vmatpush1.bf16.msra.mxu0 0
        %398 = vmatprep.subr.bf16.mxu0 0
        %399 = vmatpush1.bf16.msra.mxu0 %v256
        %400 = vmatprep.subr.bf16.mxu0 0
        %401 = vmatpush2.bf16.msra.mxu0 0
        %402 = vmatprep.subr.bf16.mxu0 0
        %403 = vmatpush2.bf16.msra.mxu0 0
        %404 = vmatprep.subr.bf16.mxu0 0
        %405 = vmatpush2.bf16.msra.mxu0 0
        %406 = vmatprep.subr.bf16.mxu0 0
        %407 = vmatpush2.bf16.msra.mxu0 0
        %408 = vmatprep.subr.bf16.mxu0 0
        %409 = vmatpush2.bf16.msra.mxu0 0
        %410 = vmatprep.subr.bf16.mxu0 0
        %411 = vmatpush2.bf16.msra.mxu0 0
        %412 = vmatprep.subr.bf16.mxu0 0
        %413 = vmatpush2.bf16.msra.mxu0 0
        %414 = vmatprep.subr.bf16.mxu0 0
        %415 = vmatpush2.bf16.msra.mxu0 0
        %416 = vmatprep.mubr.bf16.mxu0 0
        %417 = vmatmul.mubr.bf16.gmra.mxu0 %v379
        %v418 = vpop.f32.mrf.mxu0
        %v419 = vadd.f32 0.0, %v418
        %v420 = vpop.f32.mrf.mxu0
        %v421 = vpop.f32.mrf.mxu0
        %v422 = vadd.f32 0.0, %v421
        %v423 = vpop.f32.mrf.mxu0
        %424 = vmatprep.mubr.bf16.mxu0 0
        %425 = vmatmul.mubr.bf16.gmra.mxu0 %v382
        %v426 = vpop.f32.mrf.mxu0
        %v427 = vadd.f32 0.0, %v426
        %v428 = vpop.f32.mrf.mxu0
        %v429 = vpop.f32.mrf.mxu0
        %v430 = vadd.f32 0.0, %v429
        %v431 = vpop.f32.mrf.mxu0
        %432 = vdwg.mxu0
        %v433 = vsel %vm244, %v217, 0
        %v435 = vsel %vm244, %v218, 0
        %437 = vmatprep.subr.bf16.mxu0 0
        %438 = vmatpush1.bf16.msra.mxu0 0
        %439 = vmatprep.subr.bf16.mxu0 0
        %440 = vmatpush1.bf16.msra.mxu0 0
        %441 = vmatprep.subr.bf16.mxu0 0
        %442 = vmatpush1.bf16.msra.mxu0 0
        %443 = vmatprep.subr.bf16.mxu0 0
        %444 = vmatpush1.bf16.msra.mxu0 0
        %445 = vmatprep.subr.bf16.mxu0 0
        %446 = vmatpush1.bf16.msra.mxu0 0
        %447 = vmatprep.subr.bf16.mxu0 0
        %448 = vmatpush1.bf16.msra.mxu0 0
        %449 = vmatprep.subr.bf16.mxu0 0
        %450 = vmatpush1.bf16.msra.mxu0 0
        %451 = vmatprep.subr.bf16.mxu0 0
        %452 = vmatpush1.bf16.msra.mxu0 %v312
        %453 = vmatprep.subr.bf16.mxu0 0
        %454 = vmatpush2.bf16.msra.mxu0 0
        %455 = vmatprep.subr.bf16.mxu0 0
        %456 = vmatpush2.bf16.msra.mxu0 0
        %457 = vmatprep.subr.bf16.mxu0 0
        %458 = vmatpush2.bf16.msra.mxu0 0
        %459 = vmatprep.subr.bf16.mxu0 0
        %460 = vmatpush2.bf16.msra.mxu0 0
        %461 = vmatprep.subr.bf16.mxu0 0
        %462 = vmatpush2.bf16.msra.mxu0 0
        %463 = vmatprep.subr.bf16.mxu0 0
        %464 = vmatpush2.bf16.msra.mxu0 0
        %465 = vmatprep.subr.bf16.mxu0 0
        %466 = vmatpush2.bf16.msra.mxu0 0
        %467 = vmatprep.subr.bf16.mxu0 0
        %468 = vmatpush2.bf16.msra.mxu0 0
        %469 = vmatprep.mubr.bf16.mxu0 0
        %470 = vmatmul.mubr.bf16.gmra.mxu0 %v433
        %v471 = vpop.f32.mrf.mxu0
        %v472 = vadd.f32 %v419, %v471
        %v473 = vpop.f32.mrf.mxu0
        %v474 = vpop.f32.mrf.mxu0
        %v475 = vadd.f32 %v422, %v474
        %v476 = vpop.f32.mrf.mxu0
        %477 = vmatprep.mubr.bf16.mxu0 0
        %478 = vmatmul.mubr.bf16.gmra.mxu0 %v435
        %v479 = vpop.f32.mrf.mxu0
        %v480 = vadd.f32 %v427, %v479
        %v481 = vpop.f32.mrf.mxu0
        %v482 = vpop.f32.mrf.mxu0
        %v483 = vadd.f32 %v430, %v482
        %v484 = vpop.f32.mrf.mxu0
        %485 = vdwg.mxu0
        %s486 = scalar_lea.vmem %s1, 4
        %v487 = vld [vmem:[%s486] sm:$0x3]
        %vm490 = vcmask 1046528
        %v491 = vrot.slane %v215, 1
        %v492 = vrot.slane %v216, 1
        %v493 = vsel %vm490, %v491, %v492
        %v495 = vsel %vm244, %v493, 0
        %v498 = vsel %vm244, %v492, 0
        %v501 = vand.u32 %v487, %v254
        %503 = vmatprep.subr.bf16.mxu0 0
        %504 = vmatpush1.bf16.msra.mxu0 0
        %505 = vmatprep.subr.bf16.mxu0 0
        %506 = vmatpush1.bf16.msra.mxu0 0
        %507 = vmatprep.subr.bf16.mxu0 0
        %508 = vmatpush1.bf16.msra.mxu0 0
        %509 = vmatprep.subr.bf16.mxu0 0
        %510 = vmatpush1.bf16.msra.mxu0 0
        %511 = vmatprep.subr.bf16.mxu0 0
        %512 = vmatpush1.bf16.msra.mxu0 0
        %513 = vmatprep.subr.bf16.mxu0 0
        %514 = vmatpush1.bf16.msra.mxu0 0
        %515 = vmatprep.subr.bf16.mxu0 0
        %516 = vmatpush1.bf16.msra.mxu0 0
        %517 = vmatprep.subr.bf16.mxu0 0
        %518 = vmatpush1.bf16.msra.mxu0 %v501
        %519 = vmatprep.subr.bf16.mxu0 0
        %520 = vmatpush2.bf16.msra.mxu0 0
        %521 = vmatprep.subr.bf16.mxu0 0
        %522 = vmatpush2.bf16.msra.mxu0 0
        %523 = vmatprep.subr.bf16.mxu0 0
        %524 = vmatpush2.bf16.msra.mxu0 0
        %525 = vmatprep.subr.bf16.mxu0 0
        %526 = vmatpush2.bf16.msra.mxu0 0
        %527 = vmatprep.subr.bf16.mxu0 0
        %528 = vmatpush2.bf16.msra.mxu0 0
        %529 = vmatprep.subr.bf16.mxu0 0
        %530 = vmatpush2.bf16.msra.mxu0 0
        %531 = vmatprep.subr.bf16.mxu0 0
        %532 = vmatpush2.bf16.msra.mxu0 0
        %533 = vmatprep.subr.bf16.mxu0 0
        %534 = vmatpush2.bf16.msra.mxu0 0
        %535 = vmatprep.mubr.bf16.mxu0 0
        %536 = vmatmul.mubr.bf16.gmra.mxu0 %v495
        %v537 = vpop.f32.mrf.mxu0
        %v538 = vadd.f32 0.0, %v537
        %v539 = vpop.f32.mrf.mxu0
        %v540 = vpop.f32.mrf.mxu0
        %v541 = vadd.f32 0.0, %v540
        %v542 = vpop.f32.mrf.mxu0
        %543 = vmatprep.mubr.bf16.mxu0 0
        %544 = vmatmul.mubr.bf16.gmra.mxu0 %v498
        %v545 = vpop.f32.mrf.mxu0
        %v546 = vadd.f32 0.0, %v545
        %v547 = vpop.f32.mrf.mxu0
        %v548 = vpop.f32.mrf.mxu0
        %v549 = vadd.f32 0.0, %v548
        %v550 = vpop.f32.mrf.mxu0
        %551 = vdwg.mxu0
        %v552 = vadd.f32 %v349, %v538
        %v553 = vadd.f32 %v352, %v541
        %v554 = vadd.f32 %v357, %v546
        %v555 = vadd.f32 %v360, %v549
        %v558 = vrot.slane %v217, 1
        %v559 = vrot.slane %v218, 1
        %v560 = vsel %vm490, %v558, %v559
        %v562 = vsel %vm244, %v560, 0
        %v565 = vsel %vm244, %v559, 0
        %567 = vmatprep.subr.bf16.mxu0 0
        %568 = vmatpush1.bf16.msra.mxu0 0
        %569 = vmatprep.subr.bf16.mxu0 0
        %570 = vmatpush1.bf16.msra.mxu0 0
        %571 = vmatprep.subr.bf16.mxu0 0
        %572 = vmatpush1.bf16.msra.mxu0 0
        %573 = vmatprep.subr.bf16.mxu0 0
        %574 = vmatpush1.bf16.msra.mxu0 0
        %575 = vmatprep.subr.bf16.mxu0 0
        %576 = vmatpush1.bf16.msra.mxu0 0
        %577 = vmatprep.subr.bf16.mxu0 0
        %578 = vmatpush1.bf16.msra.mxu0 0
        %579 = vmatprep.subr.bf16.mxu0 0
        %580 = vmatpush1.bf16.msra.mxu0 0
        %581 = vmatprep.subr.bf16.mxu0 0
        %582 = vmatpush1.bf16.msra.mxu0 %v501
        %583 = vmatprep.subr.bf16.mxu0 0
        %584 = vmatpush2.bf16.msra.mxu0 0
        %585 = vmatprep.subr.bf16.mxu0 0
        %586 = vmatpush2.bf16.msra.mxu0 0
        %587 = vmatprep.subr.bf16.mxu0 0
        %588 = vmatpush2.bf16.msra.mxu0 0
        %589 = vmatprep.subr.bf16.mxu0 0
        %590 = vmatpush2.bf16.msra.mxu0 0
        %591 = vmatprep.subr.bf16.mxu0 0
        %592 = vmatpush2.bf16.msra.mxu0 0
        %593 = vmatprep.subr.bf16.mxu0 0
        %594 = vmatpush2.bf16.msra.mxu0 0
        %595 = vmatprep.subr.bf16.mxu0 0
        %596 = vmatpush2.bf16.msra.mxu0 0
        %597 = vmatprep.subr.bf16.mxu0 0
        %598 = vmatpush2.bf16.msra.mxu0 0
        %599 = vmatprep.mubr.bf16.mxu0 0
        %600 = vmatmul.mubr.bf16.gmra.mxu0 %v562
        %v601 = vpop.f32.mrf.mxu0
        %v602 = vadd.f32 0.0, %v601
        %v603 = vpop.f32.mrf.mxu0
        %v604 = vpop.f32.mrf.mxu0
        %v605 = vadd.f32 0.0, %v604
        %v606 = vpop.f32.mrf.mxu0
        %607 = vmatprep.mubr.bf16.mxu0 0
        %608 = vmatmul.mubr.bf16.gmra.mxu0 %v565
        %v609 = vpop.f32.mrf.mxu0
        %v610 = vadd.f32 0.0, %v609
        %v611 = vpop.f32.mrf.mxu0
        %v612 = vpop.f32.mrf.mxu0
        %v613 = vadd.f32 0.0, %v612
        %v614 = vpop.f32.mrf.mxu0
        %615 = vdwg.mxu0
        %v616 = vadd.f32 %v472, %v602
        %v617 = vadd.f32 %v475, %v605
        %v618 = vadd.f32 %v480, %v610
        %v619 = vadd.f32 %v483, %v613
        %s620 = scalar_lea.vmem %s1, 6
        %v621 = vld [vmem:[%s620] sm:$0x3]
        %vm622 = vsmask.f32 6400
        %v623 = vrot.slane %v230, 1
        %v624 = vrot.slane %v232, 2
        %v625 = vor.u32 %v623, %v624
        %v626 = vrot.slane %v241, 1
        %v627 = vrot.slane %v237, 2
        %v628 = vor.u32 %v626, %v627
        %v629 = vsel %vm622, %v625, %v628
        %v631 = vsel %vm244, %v629, 0
        %v634 = vsel %vm244, %v628, 0
        %v637 = vand.u32 %v621, %v254
        %639 = vmatprep.subr.bf16.mxu0 0
        %640 = vmatpush1.bf16.msra.mxu0 0
        %641 = vmatprep.subr.bf16.mxu0 0
        %642 = vmatpush1.bf16.msra.mxu0 0
        %643 = vmatprep.subr.bf16.mxu0 0
        %644 = vmatpush1.bf16.msra.mxu0 0
        %645 = vmatprep.subr.bf16.mxu0 0
        %646 = vmatpush1.bf16.msra.mxu0 0
        %647 = vmatprep.subr.bf16.mxu0 0
        %648 = vmatpush1.bf16.msra.mxu0 0
        %649 = vmatprep.subr.bf16.mxu0 0
        %650 = vmatpush1.bf16.msra.mxu0 0
        %651 = vmatprep.subr.bf16.mxu0 0
        %652 = vmatpush1.bf16.msra.mxu0 0
        %653 = vmatprep.subr.bf16.mxu0 0
        %654 = vmatpush1.bf16.msra.mxu0 %v637
        %655 = vmatprep.subr.bf16.mxu0 0
        %656 = vmatpush2.bf16.msra.mxu0 0
        %657 = vmatprep.subr.bf16.mxu0 0
        %658 = vmatpush2.bf16.msra.mxu0 0
        %659 = vmatprep.subr.bf16.mxu0 0
        %660 = vmatpush2.bf16.msra.mxu0 0
        %661 = vmatprep.subr.bf16.mxu0 0
        %662 = vmatpush2.bf16.msra.mxu0 0
        %663 = vmatprep.subr.bf16.mxu0 0
        %664 = vmatpush2.bf16.msra.mxu0 0
        %665 = vmatprep.subr.bf16.mxu0 0
        %666 = vmatpush2.bf16.msra.mxu0 0
        %667 = vmatprep.subr.bf16.mxu0 0
        %668 = vmatpush2.bf16.msra.mxu0 0
        %669 = vmatprep.subr.bf16.mxu0 0
        %670 = vmatpush2.bf16.msra.mxu0 0
        %671 = vmatprep.mubr.bf16.mxu0 0
        %672 = vmatmul.mubr.bf16.gmra.mxu0 %v631
        %v673 = vpop.f32.mrf.mxu0
        %v674 = vadd.f32 0.0, %v673
        %v675 = vpop.f32.mrf.mxu0
        %v676 = vpop.f32.mrf.mxu0
        %v677 = vadd.f32 0.0, %v676
        %v678 = vpop.f32.mrf.mxu0
        %679 = vmatprep.mubr.bf16.mxu0 0
        %680 = vmatmul.mubr.bf16.gmra.mxu0 %v634
        %v681 = vpop.f32.mrf.mxu0
        %v682 = vadd.f32 0.0, %v681
        %v683 = vpop.f32.mrf.mxu0
        %v684 = vpop.f32.mrf.mxu0
        %v685 = vadd.f32 0.0, %v684
        %v686 = vpop.f32.mrf.mxu0
        %687 = vdwg.mxu0
        %v688 = vadd.f32 %v552, %v674
        %v689 = vadd.f32 %v553, %v677
        %v690 = vadd.f32 %v554, %v682
        %v691 = vadd.f32 %v555, %v685
        %v692 = vrot.slane %v364, 1
        %v693 = vrot.slane %v366, 2
        %v694 = vor.u32 %v692, %v693
        %v695 = vrot.slane %v375, 1
        %v696 = vrot.slane %v371, 2
        %v697 = vor.u32 %v695, %v696
        %v698 = vsel %vm622, %v694, %v697
        %v700 = vsel %vm244, %v698, 0
        %v703 = vsel %vm244, %v697, 0
        %705 = vmatprep.subr.bf16.mxu0 0
        %706 = vmatpush1.bf16.msra.mxu0 0
        %707 = vmatprep.subr.bf16.mxu0 0
        %708 = vmatpush1.bf16.msra.mxu0 0
        %709 = vmatprep.subr.bf16.mxu0 0
        %710 = vmatpush1.bf16.msra.mxu0 0
        %711 = vmatprep.subr.bf16.mxu0 0
        %712 = vmatpush1.bf16.msra.mxu0 0
        %713 = vmatprep.subr.bf16.mxu0 0
        %714 = vmatpush1.bf16.msra.mxu0 0
        %715 = vmatprep.subr.bf16.mxu0 0
        %716 = vmatpush1.bf16.msra.mxu0 0
        %717 = vmatprep.subr.bf16.mxu0 0
        %718 = vmatpush1.bf16.msra.mxu0 0
        %719 = vmatprep.subr.bf16.mxu0 0
        %720 = vmatpush1.bf16.msra.mxu0 %v637
        %721 = vmatprep.subr.bf16.mxu0 0
        %722 = vmatpush2.bf16.msra.mxu0 0
        %723 = vmatprep.subr.bf16.mxu0 0
        %724 = vmatpush2.bf16.msra.mxu0 0
        %725 = vmatprep.subr.bf16.mxu0 0
        %726 = vmatpush2.bf16.msra.mxu0 0
        %727 = vmatprep.subr.bf16.mxu0 0
        %728 = vmatpush2.bf16.msra.mxu0 0
        %729 = vmatprep.subr.bf16.mxu0 0
        %730 = vmatpush2.bf16.msra.mxu0 0
        %731 = vmatprep.subr.bf16.mxu0 0
        %732 = vmatpush2.bf16.msra.mxu0 0
        %733 = vmatprep.subr.bf16.mxu0 0
        %734 = vmatpush2.bf16.msra.mxu0 0
        %735 = vmatprep.subr.bf16.mxu0 0
        %736 = vmatpush2.bf16.msra.mxu0 0
        %737 = vmatprep.mubr.bf16.mxu0 0
        %738 = vmatmul.mubr.bf16.gmra.mxu0 %v700
        %v739 = vpop.f32.mrf.mxu0
        %v740 = vadd.f32 0.0, %v739
        %v741 = vpop.f32.mrf.mxu0
        %v742 = vpop.f32.mrf.mxu0
        %v743 = vadd.f32 0.0, %v742
        %v744 = vpop.f32.mrf.mxu0
        %745 = vmatprep.mubr.bf16.mxu0 0
        %746 = vmatmul.mubr.bf16.gmra.mxu0 %v703
        %v747 = vpop.f32.mrf.mxu0
        %v748 = vadd.f32 0.0, %v747
        %v749 = vpop.f32.mrf.mxu0
        %v750 = vpop.f32.mrf.mxu0
        %v751 = vadd.f32 0.0, %v750
        %v752 = vpop.f32.mrf.mxu0
        %753 = vdwg.mxu0
        %v754 = vadd.f32 %v616, %v740
        %v755 = vadd.f32 %v617, %v743
        %v756 = vadd.f32 %v618, %v748
        %v757 = vadd.f32 %v619, %v751
        %s758 = scalar_lea.vmem %s1, 8
        %v759 = vld [vmem:[%s758] sm:$0x3]
        %v761 = vand.u32 %v759, %v254
        %763 = vmatprep.subr.bf16.mxu0 0
        %764 = vmatpush1.bf16.msra.mxu0 0
        %765 = vmatprep.subr.bf16.mxu0 0
        %766 = vmatpush1.bf16.msra.mxu0 0
        %767 = vmatprep.subr.bf16.mxu0 0
        %768 = vmatpush1.bf16.msra.mxu0 0
        %769 = vmatprep.subr.bf16.mxu0 0
        %770 = vmatpush1.bf16.msra.mxu0 0
        %771 = vmatprep.subr.bf16.mxu0 0
        %772 = vmatpush1.bf16.msra.mxu0 0
        %773 = vmatprep.subr.bf16.mxu0 0
        %774 = vmatpush1.bf16.msra.mxu0 0
        %775 = vmatprep.subr.bf16.mxu0 0
        %776 = vmatpush1.bf16.msra.mxu0 0
        %777 = vmatprep.subr.bf16.mxu0 0
        %778 = vmatpush1.bf16.msra.mxu0 %v761
        %779 = vmatprep.subr.bf16.mxu0 0
        %780 = vmatpush2.bf16.msra.mxu0 0
        %781 = vmatprep.subr.bf16.mxu0 0
        %782 = vmatpush2.bf16.msra.mxu0 0
        %783 = vmatprep.subr.bf16.mxu0 0
        %784 = vmatpush2.bf16.msra.mxu0 0
        %785 = vmatprep.subr.bf16.mxu0 0
        %786 = vmatpush2.bf16.msra.mxu0 0
        %787 = vmatprep.subr.bf16.mxu0 0
        %788 = vmatpush2.bf16.msra.mxu0 0
        %789 = vmatprep.subr.bf16.mxu0 0
        %790 = vmatpush2.bf16.msra.mxu0 0
        %791 = vmatprep.subr.bf16.mxu0 0
        %792 = vmatpush2.bf16.msra.mxu0 0
        %793 = vmatprep.subr.bf16.mxu0 0
        %794 = vmatpush2.bf16.msra.mxu0 0
        %795 = vmatprep.mubr.bf16.mxu0 0
        %796 = vmatmul.mubr.bf16.gmra.mxu0 %v433
        %v797 = vpop.f32.mrf.mxu0
        %v798 = vadd.f32 0.0, %v797
        %v799 = vpop.f32.mrf.mxu0
        %v800 = vpop.f32.mrf.mxu0
        %v801 = vadd.f32 0.0, %v800
        %v802 = vpop.f32.mrf.mxu0
        %803 = vmatprep.mubr.bf16.mxu0 0
        %804 = vmatmul.mubr.bf16.gmra.mxu0 %v435
        %v805 = vpop.f32.mrf.mxu0
        %v806 = vadd.f32 0.0, %v805
        %v807 = vpop.f32.mrf.mxu0
        %v808 = vpop.f32.mrf.mxu0
        %v809 = vadd.f32 0.0, %v808
        %v810 = vpop.f32.mrf.mxu0
        %811 = vdwg.mxu0
        %v812 = vadd.f32 %v688, %v798
        %v813 = vadd.f32 %v689, %v801
        %v814 = vadd.f32 %v690, %v806
        %v815 = vadd.f32 %v691, %v809
        %v817 = vsel %vm244, %v219, 0
        %v820 = vsel %vm244, %v220, 0
        %822 = vmatprep.subr.bf16.mxu0 0
        %823 = vmatpush1.bf16.msra.mxu0 0
        %824 = vmatprep.subr.bf16.mxu0 0
        %825 = vmatpush1.bf16.msra.mxu0 0
        %826 = vmatprep.subr.bf16.mxu0 0
        %827 = vmatpush1.bf16.msra.mxu0 0
        %828 = vmatprep.subr.bf16.mxu0 0
        %829 = vmatpush1.bf16.msra.mxu0 0
        %830 = vmatprep.subr.bf16.mxu0 0
        %831 = vmatpush1.bf16.msra.mxu0 0
        %832 = vmatprep.subr.bf16.mxu0 0
        %833 = vmatpush1.bf16.msra.mxu0 0
        %834 = vmatprep.subr.bf16.mxu0 0
        %835 = vmatpush1.bf16.msra.mxu0 0
        %836 = vmatprep.subr.bf16.mxu0 0
        %837 = vmatpush1.bf16.msra.mxu0 %v761
        %838 = vmatprep.subr.bf16.mxu0 0
        %839 = vmatpush2.bf16.msra.mxu0 0
        %840 = vmatprep.subr.bf16.mxu0 0
        %841 = vmatpush2.bf16.msra.mxu0 0
        %842 = vmatprep.subr.bf16.mxu0 0
        %843 = vmatpush2.bf16.msra.mxu0 0
        %844 = vmatprep.subr.bf16.mxu0 0
        %845 = vmatpush2.bf16.msra.mxu0 0
        %846 = vmatprep.subr.bf16.mxu0 0
        %847 = vmatpush2.bf16.msra.mxu0 0
        %848 = vmatprep.subr.bf16.mxu0 0
        %849 = vmatpush2.bf16.msra.mxu0 0
        %850 = vmatprep.subr.bf16.mxu0 0
        %851 = vmatpush2.bf16.msra.mxu0 0
        %852 = vmatprep.subr.bf16.mxu0 0
        %853 = vmatpush2.bf16.msra.mxu0 0
        %854 = vmatprep.mubr.bf16.mxu0 0
        %855 = vmatmul.mubr.bf16.gmra.mxu0 %v817
        %v856 = vpop.f32.mrf.mxu0
        %v857 = vadd.f32 0.0, %v856
        %v858 = vpop.f32.mrf.mxu0
        %v859 = vpop.f32.mrf.mxu0
        %v860 = vadd.f32 0.0, %v859
        %v861 = vpop.f32.mrf.mxu0
        %862 = vmatprep.mubr.bf16.mxu0 0
        %863 = vmatmul.mubr.bf16.gmra.mxu0 %v820
        %v864 = vpop.f32.mrf.mxu0
        %v865 = vadd.f32 0.0, %v864
        %v866 = vpop.f32.mrf.mxu0
        %v867 = vpop.f32.mrf.mxu0
        %v868 = vadd.f32 0.0, %v867
        %v869 = vpop.f32.mrf.mxu0
        %870 = vdwg.mxu0
        %v871 = vadd.f32 %v754, %v857
        %v872 = vadd.f32 %v755, %v860
        %v873 = vadd.f32 %v756, %v865
        %v874 = vadd.f32 %v757, %v868
        %s875 = scalar_lea.vmem %s1, 10
        %v876 = vld [vmem:[%s875] sm:$0x3]
        %v878 = vand.u32 %v876, %v254
        %880 = vmatprep.subr.bf16.mxu0 0
        %881 = vmatpush1.bf16.msra.mxu0 0
        %882 = vmatprep.subr.bf16.mxu0 0
        %883 = vmatpush1.bf16.msra.mxu0 0
        %884 = vmatprep.subr.bf16.mxu0 0
        %885 = vmatpush1.bf16.msra.mxu0 0
        %886 = vmatprep.subr.bf16.mxu0 0
        %887 = vmatpush1.bf16.msra.mxu0 0
        %888 = vmatprep.subr.bf16.mxu0 0
        %889 = vmatpush1.bf16.msra.mxu0 0
        %890 = vmatprep.subr.bf16.mxu0 0
        %891 = vmatpush1.bf16.msra.mxu0 0
        %892 = vmatprep.subr.bf16.mxu0 0
        %893 = vmatpush1.bf16.msra.mxu0 0
        %894 = vmatprep.subr.bf16.mxu0 0
        %895 = vmatpush1.bf16.msra.mxu0 %v878
        %896 = vmatprep.subr.bf16.mxu0 0
        %897 = vmatpush2.bf16.msra.mxu0 0
        %898 = vmatprep.subr.bf16.mxu0 0
        %899 = vmatpush2.bf16.msra.mxu0 0
        %900 = vmatprep.subr.bf16.mxu0 0
        %901 = vmatpush2.bf16.msra.mxu0 0
        %902 = vmatprep.subr.bf16.mxu0 0
        %903 = vmatpush2.bf16.msra.mxu0 0
        %904 = vmatprep.subr.bf16.mxu0 0
        %905 = vmatpush2.bf16.msra.mxu0 0
        %906 = vmatprep.subr.bf16.mxu0 0
        %907 = vmatpush2.bf16.msra.mxu0 0
        %908 = vmatprep.subr.bf16.mxu0 0
        %909 = vmatpush2.bf16.msra.mxu0 0
        %910 = vmatprep.subr.bf16.mxu0 0
        %911 = vmatpush2.bf16.msra.mxu0 0
        %912 = vmatprep.mubr.bf16.mxu0 0
        %913 = vmatmul.mubr.bf16.gmra.mxu0 %v379
        %v914 = vpop.f32.mrf.mxu0
        %v915 = vadd.f32 0.0, %v914
        %v916 = vpop.f32.mrf.mxu0
        %v917 = vpop.f32.mrf.mxu0
        %v918 = vadd.f32 0.0, %v917
        %v919 = vpop.f32.mrf.mxu0
        %920 = vmatprep.mubr.bf16.mxu0 0
        %921 = vmatmul.mubr.bf16.gmra.mxu0 %v382
        %v922 = vpop.f32.mrf.mxu0
        %v923 = vadd.f32 0.0, %v922
        %v924 = vpop.f32.mrf.mxu0
        %v925 = vpop.f32.mrf.mxu0
        %v926 = vadd.f32 0.0, %v925
        %v927 = vpop.f32.mrf.mxu0
        %928 = vdwg.mxu0
        %v929 = vadd.f32 %v812, %v915
        %v930 = vadd.f32 %v813, %v918
        %v931 = vadd.f32 %v814, %v923
        %v932 = vadd.f32 %v815, %v926
        %v933 = vshrl.u32 %v219, 16
        %v935 = vshll.u32 %v219, 16
        %v937 = vrot.slane %v935, 1
        %v938 = vor.u32 %v933, %v937
        %v939 = vshll.u32 %v220, 16
        %v941 = vrot.slane %v939, 1
        %v942 = vsel %vm228, %v938, %v941
        %v943 = vshrl.u32 %v220, 16
        %v945 = vor.u32 %v943, %v941
        %v947 = vsel %vm244, %v942, 0
        %v950 = vsel %vm244, %v945, 0
        %952 = vmatprep.subr.bf16.mxu0 0
        %953 = vmatpush1.bf16.msra.mxu0 0
        %954 = vmatprep.subr.bf16.mxu0 0
        %955 = vmatpush1.bf16.msra.mxu0 0
        %956 = vmatprep.subr.bf16.mxu0 0
        %957 = vmatpush1.bf16.msra.mxu0 0
        %958 = vmatprep.subr.bf16.mxu0 0
        %959 = vmatpush1.bf16.msra.mxu0 0
        %960 = vmatprep.subr.bf16.mxu0 0
        %961 = vmatpush1.bf16.msra.mxu0 0
        %962 = vmatprep.subr.bf16.mxu0 0
        %963 = vmatpush1.bf16.msra.mxu0 0
        %964 = vmatprep.subr.bf16.mxu0 0
        %965 = vmatpush1.bf16.msra.mxu0 0
        %966 = vmatprep.subr.bf16.mxu0 0
        %967 = vmatpush1.bf16.msra.mxu0 %v878
        %968 = vmatprep.subr.bf16.mxu0 0
        %969 = vmatpush2.bf16.msra.mxu0 0
        %970 = vmatprep.subr.bf16.mxu0 0
        %971 = vmatpush2.bf16.msra.mxu0 0
        %972 = vmatprep.subr.bf16.mxu0 0
        %973 = vmatpush2.bf16.msra.mxu0 0
        %974 = vmatprep.subr.bf16.mxu0 0
        %975 = vmatpush2.bf16.msra.mxu0 0
        %976 = vmatprep.subr.bf16.mxu0 0
        %977 = vmatpush2.bf16.msra.mxu0 0
        %978 = vmatprep.subr.bf16.mxu0 0
        %979 = vmatpush2.bf16.msra.mxu0 0
        %980 = vmatprep.subr.bf16.mxu0 0
        %981 = vmatpush2.bf16.msra.mxu0 0
        %982 = vmatprep.subr.bf16.mxu0 0
        %983 = vmatpush2.bf16.msra.mxu0 0
        %984 = vmatprep.mubr.bf16.mxu0 0
        %985 = vmatmul.mubr.bf16.gmra.mxu0 %v947
        %v986 = vpop.f32.mrf.mxu0
        %v987 = vadd.f32 0.0, %v986
        %v988 = vpop.f32.mrf.mxu0
        %v989 = vpop.f32.mrf.mxu0
        %v990 = vadd.f32 0.0, %v989
        %v991 = vpop.f32.mrf.mxu0
        %992 = vmatprep.mubr.bf16.mxu0 0
        %993 = vmatmul.mubr.bf16.gmra.mxu0 %v950
        %v994 = vpop.f32.mrf.mxu0
        %v995 = vadd.f32 0.0, %v994
        %v996 = vpop.f32.mrf.mxu0
        %v997 = vpop.f32.mrf.mxu0
        %v998 = vadd.f32 0.0, %v997
        %v999 = vpop.f32.mrf.mxu0
        %1000 = vdwg.mxu0
        %v1001 = vadd.f32 %v871, %v987
        %v1002 = vadd.f32 %v872, %v990
        %v1003 = vadd.f32 %v873, %v995
        %v1004 = vadd.f32 %v874, %v998
        %s1005 = scalar_lea.vmem %s1, 12
        %v1006 = vld [vmem:[%s1005] sm:$0x3]
        %v1008 = vand.u32 %v1006, %v254
        %1010 = vmatprep.subr.bf16.mxu0 0
        %1011 = vmatpush1.bf16.msra.mxu0 0
        %1012 = vmatprep.subr.bf16.mxu0 0
        %1013 = vmatpush1.bf16.msra.mxu0 0
        %1014 = vmatprep.subr.bf16.mxu0 0
        %1015 = vmatpush1.bf16.msra.mxu0 0
        %1016 = vmatprep.subr.bf16.mxu0 0
        %1017 = vmatpush1.bf16.msra.mxu0 0
        %1018 = vmatprep.subr.bf16.mxu0 0
        %1019 = vmatpush1.bf16.msra.mxu0 0
        %1020 = vmatprep.subr.bf16.mxu0 0
        %1021 = vmatpush1.bf16.msra.mxu0 0
        %1022 = vmatprep.subr.bf16.mxu0 0
        %1023 = vmatpush1.bf16.msra.mxu0 0
        %1024 = vmatprep.subr.bf16.mxu0 0
        %1025 = vmatpush1.bf16.msra.mxu0 %v1008
        %1026 = vmatprep.subr.bf16.mxu0 0
        %1027 = vmatpush2.bf16.msra.mxu0 0
        %1028 = vmatprep.subr.bf16.mxu0 0
        %1029 = vmatpush2.bf16.msra.mxu0 0
        %1030 = vmatprep.subr.bf16.mxu0 0
        %1031 = vmatpush2.bf16.msra.mxu0 0
        %1032 = vmatprep.subr.bf16.mxu0 0
        %1033 = vmatpush2.bf16.msra.mxu0 0
        %1034 = vmatprep.subr.bf16.mxu0 0
        %1035 = vmatpush2.bf16.msra.mxu0 0
        %1036 = vmatprep.subr.bf16.mxu0 0
        %1037 = vmatpush2.bf16.msra.mxu0 0
        %1038 = vmatprep.subr.bf16.mxu0 0
        %1039 = vmatpush2.bf16.msra.mxu0 0
        %1040 = vmatprep.subr.bf16.mxu0 0
        %1041 = vmatpush2.bf16.msra.mxu0 0
        %1042 = vmatprep.mubr.bf16.mxu0 0
        %1043 = vmatmul.mubr.bf16.gmra.mxu0 %v562
        %v1044 = vpop.f32.mrf.mxu0
        %v1045 = vadd.f32 0.0, %v1044
        %v1046 = vpop.f32.mrf.mxu0
        %v1047 = vpop.f32.mrf.mxu0
        %v1048 = vadd.f32 0.0, %v1047
        %v1049 = vpop.f32.mrf.mxu0
        %1050 = vmatprep.mubr.bf16.mxu0 0
        %1051 = vmatmul.mubr.bf16.gmra.mxu0 %v565
        %v1052 = vpop.f32.mrf.mxu0
        %v1053 = vadd.f32 0.0, %v1052
        %v1054 = vpop.f32.mrf.mxu0
        %v1055 = vpop.f32.mrf.mxu0
        %v1056 = vadd.f32 0.0, %v1055
        %v1057 = vpop.f32.mrf.mxu0
        %1058 = vdwg.mxu0
        %v1059 = vadd.f32 %v929, %v1045
        %v1060 = vadd.f32 %v930, %v1048
        %v1061 = vadd.f32 %v931, %v1053
        %v1062 = vadd.f32 %v932, %v1056
        %v1065 = vrot.slane %v219, 1
        %v1066 = vrot.slane %v220, 1
        %v1067 = vsel %vm490, %v1065, %v1066
        %v1069 = vsel %vm244, %v1067, 0
        %v1072 = vsel %vm244, %v1066, 0
        %1074 = vmatprep.subr.bf16.mxu0 0
        %1075 = vmatpush1.bf16.msra.mxu0 0
        %1076 = vmatprep.subr.bf16.mxu0 0
        %1077 = vmatpush1.bf16.msra.mxu0 0
        %1078 = vmatprep.subr.bf16.mxu0 0
        %1079 = vmatpush1.bf16.msra.mxu0 0
        %1080 = vmatprep.subr.bf16.mxu0 0
        %1081 = vmatpush1.bf16.msra.mxu0 0
        %1082 = vmatprep.subr.bf16.mxu0 0
        %1083 = vmatpush1.bf16.msra.mxu0 0
        %1084 = vmatprep.subr.bf16.mxu0 0
        %1085 = vmatpush1.bf16.msra.mxu0 0
        %1086 = vmatprep.subr.bf16.mxu0 0
        %1087 = vmatpush1.bf16.msra.mxu0 0
        %1088 = vmatprep.subr.bf16.mxu0 0
        %1089 = vmatpush1.bf16.msra.mxu0 %v1008
        %1090 = vmatprep.subr.bf16.mxu0 0
        %1091 = vmatpush2.bf16.msra.mxu0 0
        %1092 = vmatprep.subr.bf16.mxu0 0
        %1093 = vmatpush2.bf16.msra.mxu0 0
        %1094 = vmatprep.subr.bf16.mxu0 0
        %1095 = vmatpush2.bf16.msra.mxu0 0
        %1096 = vmatprep.subr.bf16.mxu0 0
        %1097 = vmatpush2.bf16.msra.mxu0 0
        %1098 = vmatprep.subr.bf16.mxu0 0
        %1099 = vmatpush2.bf16.msra.mxu0 0
        %1100 = vmatprep.subr.bf16.mxu0 0
        %1101 = vmatpush2.bf16.msra.mxu0 0
        %1102 = vmatprep.subr.bf16.mxu0 0
        %1103 = vmatpush2.bf16.msra.mxu0 0
        %1104 = vmatprep.subr.bf16.mxu0 0
        %1105 = vmatpush2.bf16.msra.mxu0 0
        %1106 = vmatprep.mubr.bf16.mxu0 0
        %1107 = vmatmul.mubr.bf16.gmra.mxu0 %v1069
        %v1108 = vpop.f32.mrf.mxu0
        %v1109 = vadd.f32 0.0, %v1108
        %v1110 = vpop.f32.mrf.mxu0
        %v1111 = vpop.f32.mrf.mxu0
        %v1112 = vadd.f32 0.0, %v1111
        %v1113 = vpop.f32.mrf.mxu0
        %1114 = vmatprep.mubr.bf16.mxu0 0
        %1115 = vmatmul.mubr.bf16.gmra.mxu0 %v1072
        %v1116 = vpop.f32.mrf.mxu0
        %v1117 = vadd.f32 0.0, %v1116
        %v1118 = vpop.f32.mrf.mxu0
        %v1119 = vpop.f32.mrf.mxu0
        %v1120 = vadd.f32 0.0, %v1119
        %v1121 = vpop.f32.mrf.mxu0
        %1122 = vdwg.mxu0
        %v1123 = vadd.f32 %v1001, %v1109
        %v1124 = vadd.f32 %v1002, %v1112
        %v1125 = vadd.f32 %v1003, %v1117
        %v1126 = vadd.f32 %v1004, %v1120
        %s1127 = scalar_lea.vmem %s1, 14
        %v1128 = vld [vmem:[%s1127] sm:$0x3]
        %v1130 = vand.u32 %v1128, %v254
        %1132 = vmatprep.subr.bf16.mxu0 0
        %1133 = vmatpush1.bf16.msra.mxu0 0
        %1134 = vmatprep.subr.bf16.mxu0 0
        %1135 = vmatpush1.bf16.msra.mxu0 0
        %1136 = vmatprep.subr.bf16.mxu0 0
        %1137 = vmatpush1.bf16.msra.mxu0 0
        %1138 = vmatprep.subr.bf16.mxu0 0
        %1139 = vmatpush1.bf16.msra.mxu0 0
        %1140 = vmatprep.subr.bf16.mxu0 0
        %1141 = vmatpush1.bf16.msra.mxu0 0
        %1142 = vmatprep.subr.bf16.mxu0 0
        %1143 = vmatpush1.bf16.msra.mxu0 0
        %1144 = vmatprep.subr.bf16.mxu0 0
        %1145 = vmatpush1.bf16.msra.mxu0 0
        %1146 = vmatprep.subr.bf16.mxu0 0
        %1147 = vmatpush1.bf16.msra.mxu0 %v1130
        %1148 = vmatprep.subr.bf16.mxu0 0
        %1149 = vmatpush2.bf16.msra.mxu0 0
        %1150 = vmatprep.subr.bf16.mxu0 0
        %1151 = vmatpush2.bf16.msra.mxu0 0
        %1152 = vmatprep.subr.bf16.mxu0 0
        %1153 = vmatpush2.bf16.msra.mxu0 0
        %1154 = vmatprep.subr.bf16.mxu0 0
        %1155 = vmatpush2.bf16.msra.mxu0 0
        %1156 = vmatprep.subr.bf16.mxu0 0
        %1157 = vmatpush2.bf16.msra.mxu0 0
        %1158 = vmatprep.subr.bf16.mxu0 0
        %1159 = vmatpush2.bf16.msra.mxu0 0
        %1160 = vmatprep.subr.bf16.mxu0 0
        %1161 = vmatpush2.bf16.msra.mxu0 0
        %1162 = vmatprep.subr.bf16.mxu0 0
        %1163 = vmatpush2.bf16.msra.mxu0 0
        %1164 = vmatprep.mubr.bf16.mxu0 0
        %1165 = vmatmul.mubr.bf16.gmra.mxu0 %v700
        %v1166 = vpop.f32.mrf.mxu0
        %v1167 = vadd.f32 0.0, %v1166
        %v1168 = vpop.f32.mrf.mxu0
        %v1169 = vpop.f32.mrf.mxu0
        %v1170 = vadd.f32 0.0, %v1169
        %v1171 = vpop.f32.mrf.mxu0
        %1172 = vmatprep.mubr.bf16.mxu0 0
        %1173 = vmatmul.mubr.bf16.gmra.mxu0 %v703
        %v1174 = vpop.f32.mrf.mxu0
        %v1175 = vadd.f32 0.0, %v1174
        %v1176 = vpop.f32.mrf.mxu0
        %v1177 = vpop.f32.mrf.mxu0
        %v1178 = vadd.f32 0.0, %v1177
        %v1179 = vpop.f32.mrf.mxu0
        %1180 = vdwg.mxu0
        %v1181 = vadd.f32 %v1059, %v1167
        %v1182 = vadd.f32 %v1060, %v1170
        %v1183 = vadd.f32 %v1061, %v1175
        %v1184 = vadd.f32 %v1062, %v1178
        %v1185 = vrot.slane %v933, 1
        %v1186 = vrot.slane %v935, 2
        %v1187 = vor.u32 %v1185, %v1186
        %v1188 = vrot.slane %v943, 1
        %v1189 = vrot.slane %v939, 2
        %v1190 = vor.u32 %v1188, %v1189
        %v1191 = vsel %vm622, %v1187, %v1190
        %v1193 = vsel %vm244, %v1191, 0
        %v1196 = vsel %vm244, %v1190, 0
        %1198 = vmatprep.subr.bf16.mxu0 0
        %1199 = vmatpush1.bf16.msra.mxu0 0
        %1200 = vmatprep.subr.bf16.mxu0 0
        %1201 = vmatpush1.bf16.msra.mxu0 0
        %1202 = vmatprep.subr.bf16.mxu0 0
        %1203 = vmatpush1.bf16.msra.mxu0 0
        %1204 = vmatprep.subr.bf16.mxu0 0
        %1205 = vmatpush1.bf16.msra.mxu0 0
        %1206 = vmatprep.subr.bf16.mxu0 0
        %1207 = vmatpush1.bf16.msra.mxu0 0
        %1208 = vmatprep.subr.bf16.mxu0 0
        %1209 = vmatpush1.bf16.msra.mxu0 0
        %1210 = vmatprep.subr.bf16.mxu0 0
        %1211 = vmatpush1.bf16.msra.mxu0 0
        %1212 = vmatprep.subr.bf16.mxu0 0
        %1213 = vmatpush1.bf16.msra.mxu0 %v1130
        %1214 = vmatprep.subr.bf16.mxu0 0
        %1215 = vmatpush2.bf16.msra.mxu0 0
        %1216 = vmatprep.subr.bf16.mxu0 0
        %1217 = vmatpush2.bf16.msra.mxu0 0
        %1218 = vmatprep.subr.bf16.mxu0 0
        %1219 = vmatpush2.bf16.msra.mxu0 0
        %1220 = vmatprep.subr.bf16.mxu0 0
        %1221 = vmatpush2.bf16.msra.mxu0 0
        %1222 = vmatprep.subr.bf16.mxu0 0
        %1223 = vmatpush2.bf16.msra.mxu0 0
        %1224 = vmatprep.subr.bf16.mxu0 0
        %1225 = vmatpush2.bf16.msra.mxu0 0
        %1226 = vmatprep.subr.bf16.mxu0 0
        %1227 = vmatpush2.bf16.msra.mxu0 0
        %1228 = vmatprep.subr.bf16.mxu0 0
        %1229 = vmatpush2.bf16.msra.mxu0 0
        %1230 = vmatprep.mubr.bf16.mxu0 0
        %1231 = vmatmul.mubr.bf16.gmra.mxu0 %v1193
        %v1232 = vpop.f32.mrf.mxu0
        %v1233 = vadd.f32 0.0, %v1232
        %v1234 = vpop.f32.mrf.mxu0
        %v1235 = vpop.f32.mrf.mxu0
        %v1236 = vadd.f32 0.0, %v1235
        %v1237 = vpop.f32.mrf.mxu0
        %1238 = vmatprep.mubr.bf16.mxu0 0
        %1239 = vmatmul.mubr.bf16.gmra.mxu0 %v1196
        %v1240 = vpop.f32.mrf.mxu0
        %v1241 = vadd.f32 0.0, %v1240
        %v1242 = vpop.f32.mrf.mxu0
        %v1243 = vpop.f32.mrf.mxu0
        %v1244 = vadd.f32 0.0, %v1243
        %v1245 = vpop.f32.mrf.mxu0
        %1246 = vdwg.mxu0
        %v1247 = vadd.f32 %v1123, %v1233
        %v1248 = vadd.f32 %v1124, %v1236
        %v1249 = vadd.f32 %v1125, %v1241
        %v1250 = vadd.f32 %v1126, %v1244
        %s1251 = scalar_lea.vmem %s1, 16
        %v1252 = vld [vmem:[%s1251] sm:$0x3]
        %v1254 = vand.u32 %v1252, %v254
        %1256 = vmatprep.subr.bf16.mxu0 0
        %1257 = vmatpush1.bf16.msra.mxu0 0
        %1258 = vmatprep.subr.bf16.mxu0 0
        %1259 = vmatpush1.bf16.msra.mxu0 0
        %1260 = vmatprep.subr.bf16.mxu0 0
        %1261 = vmatpush1.bf16.msra.mxu0 0
        %1262 = vmatprep.subr.bf16.mxu0 0
        %1263 = vmatpush1.bf16.msra.mxu0 0
        %1264 = vmatprep.subr.bf16.mxu0 0
        %1265 = vmatpush1.bf16.msra.mxu0 0
        %1266 = vmatprep.subr.bf16.mxu0 0
        %1267 = vmatpush1.bf16.msra.mxu0 0
        %1268 = vmatprep.subr.bf16.mxu0 0
        %1269 = vmatpush1.bf16.msra.mxu0 0
        %1270 = vmatprep.subr.bf16.mxu0 0
        %1271 = vmatpush1.bf16.msra.mxu0 %v1254
        %1272 = vmatprep.subr.bf16.mxu0 0
        %1273 = vmatpush2.bf16.msra.mxu0 0
        %1274 = vmatprep.subr.bf16.mxu0 0
        %1275 = vmatpush2.bf16.msra.mxu0 0
        %1276 = vmatprep.subr.bf16.mxu0 0
        %1277 = vmatpush2.bf16.msra.mxu0 0
        %1278 = vmatprep.subr.bf16.mxu0 0
        %1279 = vmatpush2.bf16.msra.mxu0 0
        %1280 = vmatprep.subr.bf16.mxu0 0
        %1281 = vmatpush2.bf16.msra.mxu0 0
        %1282 = vmatprep.subr.bf16.mxu0 0
        %1283 = vmatpush2.bf16.msra.mxu0 0
        %1284 = vmatprep.subr.bf16.mxu0 0
        %1285 = vmatpush2.bf16.msra.mxu0 0
        %1286 = vmatprep.subr.bf16.mxu0 0
        %1287 = vmatpush2.bf16.msra.mxu0 0
        %1288 = vmatprep.mubr.bf16.mxu0 0
        %1289 = vmatmul.mubr.bf16.gmra.mxu0 %v817
        %v1290 = vpop.f32.mrf.mxu0
        %v1291 = vadd.f32 0.0, %v1290
        %v1292 = vpop.f32.mrf.mxu0
        %v1293 = vpop.f32.mrf.mxu0
        %v1294 = vadd.f32 0.0, %v1293
        %v1295 = vpop.f32.mrf.mxu0
        %1296 = vmatprep.mubr.bf16.mxu0 0
        %1297 = vmatmul.mubr.bf16.gmra.mxu0 %v820
        %v1298 = vpop.f32.mrf.mxu0
        %v1299 = vadd.f32 0.0, %v1298
        %v1300 = vpop.f32.mrf.mxu0
        %v1301 = vpop.f32.mrf.mxu0
        %v1302 = vadd.f32 0.0, %v1301
        %v1303 = vpop.f32.mrf.mxu0
        %1304 = vdwg.mxu0
        %v1305 = vadd.f32 %v1181, %v1291
        %v1306 = vadd.f32 %v1182, %v1294
        %v1307 = vadd.f32 %v1183, %v1299
        %v1308 = vadd.f32 %v1184, %v1302
        %v1310 = vsel %vm244, %v221, 0
        %v1313 = vsel %vm244, %v222, 0
        %1315 = vmatprep.subr.bf16.mxu0 0
        %1316 = vmatpush1.bf16.msra.mxu0 0
        %1317 = vmatprep.subr.bf16.mxu0 0
        %1318 = vmatpush1.bf16.msra.mxu0 0
        %1319 = vmatprep.subr.bf16.mxu0 0
        %1320 = vmatpush1.bf16.msra.mxu0 0
        %1321 = vmatprep.subr.bf16.mxu0 0
        %1322 = vmatpush1.bf16.msra.mxu0 0
        %1323 = vmatprep.subr.bf16.mxu0 0
        %1324 = vmatpush1.bf16.msra.mxu0 0
        %1325 = vmatprep.subr.bf16.mxu0 0
        %1326 = vmatpush1.bf16.msra.mxu0 0
        %1327 = vmatprep.subr.bf16.mxu0 0
        %1328 = vmatpush1.bf16.msra.mxu0 0
        %1329 = vmatprep.subr.bf16.mxu0 0
        %1330 = vmatpush1.bf16.msra.mxu0 %v1254
        %1331 = vmatprep.subr.bf16.mxu0 0
        %1332 = vmatpush2.bf16.msra.mxu0 0
        %1333 = vmatprep.subr.bf16.mxu0 0
        %1334 = vmatpush2.bf16.msra.mxu0 0
        %1335 = vmatprep.subr.bf16.mxu0 0
        %1336 = vmatpush2.bf16.msra.mxu0 0
        %1337 = vmatprep.subr.bf16.mxu0 0
        %1338 = vmatpush2.bf16.msra.mxu0 0
        %1339 = vmatprep.subr.bf16.mxu0 0
        %1340 = vmatpush2.bf16.msra.mxu0 0
        %1341 = vmatprep.subr.bf16.mxu0 0
        %1342 = vmatpush2.bf16.msra.mxu0 0
        %1343 = vmatprep.subr.bf16.mxu0 0
        %1344 = vmatpush2.bf16.msra.mxu0 0
        %1345 = vmatprep.subr.bf16.mxu0 0
        %1346 = vmatpush2.bf16.msra.mxu0 0
        %1347 = vmatprep.mubr.bf16.mxu0 0
        %1348 = vmatmul.mubr.bf16.gmra.mxu0 %v1310
        %v1349 = vpop.f32.mrf.mxu0
        %v1350 = vadd.f32 0.0, %v1349
        %v1351 = vpop.f32.mrf.mxu0
        %v1352 = vpop.f32.mrf.mxu0
        %v1353 = vadd.f32 0.0, %v1352
        %v1354 = vpop.f32.mrf.mxu0
        %1355 = vmatprep.mubr.bf16.mxu0 0
        %1356 = vmatmul.mubr.bf16.gmra.mxu0 %v1313
        %v1357 = vpop.f32.mrf.mxu0
        %v1358 = vadd.f32 0.0, %v1357
        %v1359 = vpop.f32.mrf.mxu0
        %v1360 = vpop.f32.mrf.mxu0
        %v1361 = vadd.f32 0.0, %v1360
        %v1362 = vpop.f32.mrf.mxu0
        %1363 = vdwg.mxu0
        %v1364 = vadd.f32 %v1247, %v1350
        %v1365 = vadd.f32 %v1248, %v1353
        %v1366 = vadd.f32 %v1249, %v1358
        %v1367 = vadd.f32 %v1250, %v1361
        %s1368 = scalar_lea.vmem %s1, 18
        %v1369 = vld [vmem:[%s1368] sm:$0x3]
        %v1371 = vand.u32 %v1369, %v254
        %1373 = vmatprep.subr.bf16.mxu0 0
        %1374 = vmatpush1.bf16.msra.mxu0 0
        %1375 = vmatprep.subr.bf16.mxu0 0
        %1376 = vmatpush1.bf16.msra.mxu0 0
        %1377 = vmatprep.subr.bf16.mxu0 0
        %1378 = vmatpush1.bf16.msra.mxu0 0
        %1379 = vmatprep.subr.bf16.mxu0 0
        %1380 = vmatpush1.bf16.msra.mxu0 0
        %1381 = vmatprep.subr.bf16.mxu0 0
        %1382 = vmatpush1.bf16.msra.mxu0 0
        %1383 = vmatprep.subr.bf16.mxu0 0
        %1384 = vmatpush1.bf16.msra.mxu0 0
        %1385 = vmatprep.subr.bf16.mxu0 0
        %1386 = vmatpush1.bf16.msra.mxu0 0
        %1387 = vmatprep.subr.bf16.mxu0 0
        %1388 = vmatpush1.bf16.msra.mxu0 %v1371
        %1389 = vmatprep.subr.bf16.mxu0 0
        %1390 = vmatpush2.bf16.msra.mxu0 0
        %1391 = vmatprep.subr.bf16.mxu0 0
        %1392 = vmatpush2.bf16.msra.mxu0 0
        %1393 = vmatprep.subr.bf16.mxu0 0
        %1394 = vmatpush2.bf16.msra.mxu0 0
        %1395 = vmatprep.subr.bf16.mxu0 0
        %1396 = vmatpush2.bf16.msra.mxu0 0
        %1397 = vmatprep.subr.bf16.mxu0 0
        %1398 = vmatpush2.bf16.msra.mxu0 0
        %1399 = vmatprep.subr.bf16.mxu0 0
        %1400 = vmatpush2.bf16.msra.mxu0 0
        %1401 = vmatprep.subr.bf16.mxu0 0
        %1402 = vmatpush2.bf16.msra.mxu0 0
        %1403 = vmatprep.subr.bf16.mxu0 0
        %1404 = vmatpush2.bf16.msra.mxu0 0
        %1405 = vmatprep.mubr.bf16.mxu0 0
        %1406 = vmatmul.mubr.bf16.gmra.mxu0 %v947
        %v1407 = vpop.f32.mrf.mxu0
        %v1408 = vadd.f32 0.0, %v1407
        %v1409 = vpop.f32.mrf.mxu0
        %v1410 = vpop.f32.mrf.mxu0
        %v1411 = vadd.f32 0.0, %v1410
        %v1412 = vpop.f32.mrf.mxu0
        %1413 = vmatprep.mubr.bf16.mxu0 0
        %1414 = vmatmul.mubr.bf16.gmra.mxu0 %v950
        %v1415 = vpop.f32.mrf.mxu0
        %v1416 = vadd.f32 0.0, %v1415
        %v1417 = vpop.f32.mrf.mxu0
        %v1418 = vpop.f32.mrf.mxu0
        %v1419 = vadd.f32 0.0, %v1418
        %v1420 = vpop.f32.mrf.mxu0
        %1421 = vdwg.mxu0
        %v1422 = vadd.f32 %v1305, %v1408
        %v1423 = vadd.f32 %v1306, %v1411
        %v1424 = vadd.f32 %v1307, %v1416
        %v1425 = vadd.f32 %v1308, %v1419
        %v1426 = vshrl.u32 %v221, 16
        %v1428 = vshll.u32 %v221, 16
        %v1430 = vrot.slane %v1428, 1
        %v1431 = vor.u32 %v1426, %v1430
        %v1432 = vshll.u32 %v222, 16
        %v1434 = vrot.slane %v1432, 1
        %v1435 = vsel %vm228, %v1431, %v1434
        %v1436 = vshrl.u32 %v222, 16
        %v1438 = vor.u32 %v1436, %v1434
        %v1440 = vsel %vm244, %v1435, 0
        %v1443 = vsel %vm244, %v1438, 0
        %1445 = vmatprep.subr.bf16.mxu0 0
        %1446 = vmatpush1.bf16.msra.mxu0 0
        %1447 = vmatprep.subr.bf16.mxu0 0
        %1448 = vmatpush1.bf16.msra.mxu0 0
        %1449 = vmatprep.subr.bf16.mxu0 0
        %1450 = vmatpush1.bf16.msra.mxu0 0
        %1451 = vmatprep.subr.bf16.mxu0 0
        %1452 = vmatpush1.bf16.msra.mxu0 0
        %1453 = vmatprep.subr.bf16.mxu0 0
        %1454 = vmatpush1.bf16.msra.mxu0 0
        %1455 = vmatprep.subr.bf16.mxu0 0
        %1456 = vmatpush1.bf16.msra.mxu0 0
        %1457 = vmatprep.subr.bf16.mxu0 0
        %1458 = vmatpush1.bf16.msra.mxu0 0
        %1459 = vmatprep.subr.bf16.mxu0 0
        %1460 = vmatpush1.bf16.msra.mxu0 %v1371
        %1461 = vmatprep.subr.bf16.mxu0 0
        %1462 = vmatpush2.bf16.msra.mxu0 0
        %1463 = vmatprep.subr.bf16.mxu0 0
        %1464 = vmatpush2.bf16.msra.mxu0 0
        %1465 = vmatprep.subr.bf16.mxu0 0
        %1466 = vmatpush2.bf16.msra.mxu0 0
        %1467 = vmatprep.subr.bf16.mxu0 0
        %1468 = vmatpush2.bf16.msra.mxu0 0
        %1469 = vmatprep.subr.bf16.mxu0 0
        %1470 = vmatpush2.bf16.msra.mxu0 0
        %1471 = vmatprep.subr.bf16.mxu0 0
        %1472 = vmatpush2.bf16.msra.mxu0 0
        %1473 = vmatprep.subr.bf16.mxu0 0
        %1474 = vmatpush2.bf16.msra.mxu0 0
        %1475 = vmatprep.subr.bf16.mxu0 0
        %1476 = vmatpush2.bf16.msra.mxu0 0
        %1477 = vmatprep.mubr.bf16.mxu0 0
        %1478 = vmatmul.mubr.bf16.gmra.mxu0 %v1440
        %v1479 = vpop.f32.mrf.mxu0
        %v1480 = vadd.f32 0.0, %v1479
        %v1481 = vpop.f32.mrf.mxu0
        %v1482 = vpop.f32.mrf.mxu0
        %v1483 = vadd.f32 0.0, %v1482
        %v1484 = vpop.f32.mrf.mxu0
        %1485 = vmatprep.mubr.bf16.mxu0 0
        %1486 = vmatmul.mubr.bf16.gmra.mxu0 %v1443
        %v1487 = vpop.f32.mrf.mxu0
        %v1488 = vadd.f32 0.0, %v1487
        %v1489 = vpop.f32.mrf.mxu0
        %v1490 = vpop.f32.mrf.mxu0
        %v1491 = vadd.f32 0.0, %v1490
        %v1492 = vpop.f32.mrf.mxu0
        %1493 = vdwg.mxu0
        %v1494 = vadd.f32 %v1364, %v1480
        %v1495 = vadd.f32 %v1365, %v1483
        %v1496 = vadd.f32 %v1366, %v1488
        %v1497 = vadd.f32 %v1367, %v1491
        %s1498 = scalar_lea.vmem %s1, 20
        %v1499 = vld [vmem:[%s1498] sm:$0x3]
        %v1501 = vand.u32 %v1499, %v254
        %1503 = vmatprep.subr.bf16.mxu0 0
        %1504 = vmatpush1.bf16.msra.mxu0 0
        %1505 = vmatprep.subr.bf16.mxu0 0
        %1506 = vmatpush1.bf16.msra.mxu0 0
        %1507 = vmatprep.subr.bf16.mxu0 0
        %1508 = vmatpush1.bf16.msra.mxu0 0
        %1509 = vmatprep.subr.bf16.mxu0 0
        %1510 = vmatpush1.bf16.msra.mxu0 0
        %1511 = vmatprep.subr.bf16.mxu0 0
        %1512 = vmatpush1.bf16.msra.mxu0 0
        %1513 = vmatprep.subr.bf16.mxu0 0
        %1514 = vmatpush1.bf16.msra.mxu0 0
        %1515 = vmatprep.subr.bf16.mxu0 0
        %1516 = vmatpush1.bf16.msra.mxu0 0
        %1517 = vmatprep.subr.bf16.mxu0 0
        %1518 = vmatpush1.bf16.msra.mxu0 %v1501
        %1519 = vmatprep.subr.bf16.mxu0 0
        %1520 = vmatpush2.bf16.msra.mxu0 0
        %1521 = vmatprep.subr.bf16.mxu0 0
        %1522 = vmatpush2.bf16.msra.mxu0 0
        %1523 = vmatprep.subr.bf16.mxu0 0
        %1524 = vmatpush2.bf16.msra.mxu0 0
        %1525 = vmatprep.subr.bf16.mxu0 0
        %1526 = vmatpush2.bf16.msra.mxu0 0
        %1527 = vmatprep.subr.bf16.mxu0 0
        %1528 = vmatpush2.bf16.msra.mxu0 0
        %1529 = vmatprep.subr.bf16.mxu0 0
        %1530 = vmatpush2.bf16.msra.mxu0 0
        %1531 = vmatprep.subr.bf16.mxu0 0
        %1532 = vmatpush2.bf16.msra.mxu0 0
        %1533 = vmatprep.subr.bf16.mxu0 0
        %1534 = vmatpush2.bf16.msra.mxu0 0
        %1535 = vmatprep.mubr.bf16.mxu0 0
        %1536 = vmatmul.mubr.bf16.gmra.mxu0 %v1069
        %v1537 = vpop.f32.mrf.mxu0
        %v1538 = vadd.f32 0.0, %v1537
        %v1539 = vpop.f32.mrf.mxu0
        %v1540 = vpop.f32.mrf.mxu0
        %v1541 = vadd.f32 0.0, %v1540
        %v1542 = vpop.f32.mrf.mxu0
        %1543 = vmatprep.mubr.bf16.mxu0 0
        %1544 = vmatmul.mubr.bf16.gmra.mxu0 %v1072
        %v1545 = vpop.f32.mrf.mxu0
        %v1546 = vadd.f32 0.0, %v1545
        %v1547 = vpop.f32.mrf.mxu0
        %v1548 = vpop.f32.mrf.mxu0
        %v1549 = vadd.f32 0.0, %v1548
        %v1550 = vpop.f32.mrf.mxu0
        %1551 = vdwg.mxu0
        %v1552 = vadd.f32 %v1422, %v1538
        %v1553 = vadd.f32 %v1423, %v1541
        %v1554 = vadd.f32 %v1424, %v1546
        %v1555 = vadd.f32 %v1425, %v1549
        %v1558 = vrot.slane %v221, 1
        %v1559 = vrot.slane %v222, 1
        %v1560 = vsel %vm490, %v1558, %v1559
        %v1562 = vsel %vm244, %v1560, 0
        %v1565 = vsel %vm244, %v1559, 0
        %1567 = vmatprep.subr.bf16.mxu0 0
        %1568 = vmatpush1.bf16.msra.mxu0 0
        %1569 = vmatprep.subr.bf16.mxu0 0
        %1570 = vmatpush1.bf16.msra.mxu0 0
        %1571 = vmatprep.subr.bf16.mxu0 0
        %1572 = vmatpush1.bf16.msra.mxu0 0
        %1573 = vmatprep.subr.bf16.mxu0 0
        %1574 = vmatpush1.bf16.msra.mxu0 0
        %1575 = vmatprep.subr.bf16.mxu0 0
        %1576 = vmatpush1.bf16.msra.mxu0 0
        %1577 = vmatprep.subr.bf16.mxu0 0
        %1578 = vmatpush1.bf16.msra.mxu0 0
        %1579 = vmatprep.subr.bf16.mxu0 0
        %1580 = vmatpush1.bf16.msra.mxu0 0
        %1581 = vmatprep.subr.bf16.mxu0 0
        %1582 = vmatpush1.bf16.msra.mxu0 %v1501
        %1583 = vmatprep.subr.bf16.mxu0 0
        %1584 = vmatpush2.bf16.msra.mxu0 0
        %1585 = vmatprep.subr.bf16.mxu0 0
        %1586 = vmatpush2.bf16.msra.mxu0 0
        %1587 = vmatprep.subr.bf16.mxu0 0
        %1588 = vmatpush2.bf16.msra.mxu0 0
        %1589 = vmatprep.subr.bf16.mxu0 0
        %1590 = vmatpush2.bf16.msra.mxu0 0
        %1591 = vmatprep.subr.bf16.mxu0 0
        %1592 = vmatpush2.bf16.msra.mxu0 0
        %1593 = vmatprep.subr.bf16.mxu0 0
        %1594 = vmatpush2.bf16.msra.mxu0 0
        %1595 = vmatprep.subr.bf16.mxu0 0
        %1596 = vmatpush2.bf16.msra.mxu0 0
        %1597 = vmatprep.subr.bf16.mxu0 0
        %1598 = vmatpush2.bf16.msra.mxu0 0
        %1599 = vmatprep.mubr.bf16.mxu0 0
        %1600 = vmatmul.mubr.bf16.gmra.mxu0 %v1562
        %v1601 = vpop.f32.mrf.mxu0
        %v1602 = vadd.f32 0.0, %v1601
        %v1603 = vpop.f32.mrf.mxu0
        %v1604 = vpop.f32.mrf.mxu0
        %v1605 = vadd.f32 0.0, %v1604
        %v1606 = vpop.f32.mrf.mxu0
        %1607 = vmatprep.mubr.bf16.mxu0 0
        %1608 = vmatmul.mubr.bf16.gmra.mxu0 %v1565
        %v1609 = vpop.f32.mrf.mxu0
        %v1610 = vadd.f32 0.0, %v1609
        %v1611 = vpop.f32.mrf.mxu0
        %v1612 = vpop.f32.mrf.mxu0
        %v1613 = vadd.f32 0.0, %v1612
        %v1614 = vpop.f32.mrf.mxu0
        %1615 = vdwg.mxu0
        %v1616 = vadd.f32 %v1494, %v1602
        %v1617 = vadd.f32 %v1495, %v1605
        %v1618 = vadd.f32 %v1496, %v1610
        %v1619 = vadd.f32 %v1497, %v1613
        %s1620 = scalar_lea.vmem %s1, 22
        %v1621 = vld [vmem:[%s1620] sm:$0x3]
        %v1623 = vand.u32 %v1621, %v254
        %1625 = vmatprep.subr.bf16.mxu0 0
        %1626 = vmatpush1.bf16.msra.mxu0 0
        %1627 = vmatprep.subr.bf16.mxu0 0
        %1628 = vmatpush1.bf16.msra.mxu0 0
        %1629 = vmatprep.subr.bf16.mxu0 0
        %1630 = vmatpush1.bf16.msra.mxu0 0
        %1631 = vmatprep.subr.bf16.mxu0 0
        %1632 = vmatpush1.bf16.msra.mxu0 0
        %1633 = vmatprep.subr.bf16.mxu0 0
        %1634 = vmatpush1.bf16.msra.mxu0 0
        %1635 = vmatprep.subr.bf16.mxu0 0
        %1636 = vmatpush1.bf16.msra.mxu0 0
        %1637 = vmatprep.subr.bf16.mxu0 0
        %1638 = vmatpush1.bf16.msra.mxu0 0
        %1639 = vmatprep.subr.bf16.mxu0 0
        %1640 = vmatpush1.bf16.msra.mxu0 %v1623
        %1641 = vmatprep.subr.bf16.mxu0 0
        %1642 = vmatpush2.bf16.msra.mxu0 0
        %1643 = vmatprep.subr.bf16.mxu0 0
        %1644 = vmatpush2.bf16.msra.mxu0 0
        %1645 = vmatprep.subr.bf16.mxu0 0
        %1646 = vmatpush2.bf16.msra.mxu0 0
        %1647 = vmatprep.subr.bf16.mxu0 0
        %1648 = vmatpush2.bf16.msra.mxu0 0
        %1649 = vmatprep.subr.bf16.mxu0 0
        %1650 = vmatpush2.bf16.msra.mxu0 0
        %1651 = vmatprep.subr.bf16.mxu0 0
        %1652 = vmatpush2.bf16.msra.mxu0 0
        %1653 = vmatprep.subr.bf16.mxu0 0
        %1654 = vmatpush2.bf16.msra.mxu0 0
        %1655 = vmatprep.subr.bf16.mxu0 0
        %1656 = vmatpush2.bf16.msra.mxu0 0
        %1657 = vmatprep.mubr.bf16.mxu0 0
        %1658 = vmatmul.mubr.bf16.gmra.mxu0 %v1193
        %v1659 = vpop.f32.mrf.mxu0
        %v1660 = vadd.f32 0.0, %v1659
        %v1661 = vpop.f32.mrf.mxu0
        %v1662 = vpop.f32.mrf.mxu0
        %v1663 = vadd.f32 0.0, %v1662
        %v1664 = vpop.f32.mrf.mxu0
        %1665 = vmatprep.mubr.bf16.mxu0 0
        %1666 = vmatmul.mubr.bf16.gmra.mxu0 %v1196
        %v1667 = vpop.f32.mrf.mxu0
        %v1668 = vadd.f32 0.0, %v1667
        %v1669 = vpop.f32.mrf.mxu0
        %v1670 = vpop.f32.mrf.mxu0
        %v1671 = vadd.f32 0.0, %v1670
        %v1672 = vpop.f32.mrf.mxu0
        %1673 = vdwg.mxu0
        %v1674 = vadd.f32 %v1552, %v1660
        %v1675 = vadd.f32 %v1553, %v1663
        %v1676 = vadd.f32 %v1554, %v1668
        %v1677 = vadd.f32 %v1555, %v1671
        %v1678 = vrot.slane %v1426, 1
        %v1679 = vrot.slane %v1428, 2
        %v1680 = vor.u32 %v1678, %v1679
        %v1681 = vrot.slane %v1436, 1
        %v1682 = vrot.slane %v1432, 2
        %v1683 = vor.u32 %v1681, %v1682
        %v1684 = vsel %vm622, %v1680, %v1683
        %v1686 = vsel %vm244, %v1684, 0
        %v1689 = vsel %vm244, %v1683, 0
        %1691 = vmatprep.subr.bf16.mxu0 0
        %1692 = vmatpush1.bf16.msra.mxu0 0
        %1693 = vmatprep.subr.bf16.mxu0 0
        %1694 = vmatpush1.bf16.msra.mxu0 0
        %1695 = vmatprep.subr.bf16.mxu0 0
        %1696 = vmatpush1.bf16.msra.mxu0 0
        %1697 = vmatprep.subr.bf16.mxu0 0
        %1698 = vmatpush1.bf16.msra.mxu0 0
        %1699 = vmatprep.subr.bf16.mxu0 0
        %1700 = vmatpush1.bf16.msra.mxu0 0
        %1701 = vmatprep.subr.bf16.mxu0 0
        %1702 = vmatpush1.bf16.msra.mxu0 0
        %1703 = vmatprep.subr.bf16.mxu0 0
        %1704 = vmatpush1.bf16.msra.mxu0 0
        %1705 = vmatprep.subr.bf16.mxu0 0
        %1706 = vmatpush1.bf16.msra.mxu0 %v1623
        %1707 = vmatprep.subr.bf16.mxu0 0
        %1708 = vmatpush2.bf16.msra.mxu0 0
        %1709 = vmatprep.subr.bf16.mxu0 0
        %1710 = vmatpush2.bf16.msra.mxu0 0
        %1711 = vmatprep.subr.bf16.mxu0 0
        %1712 = vmatpush2.bf16.msra.mxu0 0
        %1713 = vmatprep.subr.bf16.mxu0 0
        %1714 = vmatpush2.bf16.msra.mxu0 0
        %1715 = vmatprep.subr.bf16.mxu0 0
        %1716 = vmatpush2.bf16.msra.mxu0 0
        %1717 = vmatprep.subr.bf16.mxu0 0
        %1718 = vmatpush2.bf16.msra.mxu0 0
        %1719 = vmatprep.subr.bf16.mxu0 0
        %1720 = vmatpush2.bf16.msra.mxu0 0
        %1721 = vmatprep.subr.bf16.mxu0 0
        %1722 = vmatpush2.bf16.msra.mxu0 0
        %1723 = vmatprep.mubr.bf16.mxu0 0
        %1724 = vmatmul.mubr.bf16.gmra.mxu0 %v1686
        %v1725 = vpop.f32.mrf.mxu0
        %v1726 = vadd.f32 0.0, %v1725
        %v1727 = vpop.f32.mrf.mxu0
        %v1728 = vpop.f32.mrf.mxu0
        %v1729 = vadd.f32 0.0, %v1728
        %v1730 = vpop.f32.mrf.mxu0
        %1731 = vmatprep.mubr.bf16.mxu0 0
        %1732 = vmatmul.mubr.bf16.gmra.mxu0 %v1689
        %v1733 = vpop.f32.mrf.mxu0
        %v1734 = vadd.f32 0.0, %v1733
        %v1735 = vpop.f32.mrf.mxu0
        %v1736 = vpop.f32.mrf.mxu0
        %v1737 = vadd.f32 0.0, %v1736
        %v1738 = vpop.f32.mrf.mxu0
        %1739 = vdwg.mxu0
        %v1740 = vadd.f32 %v1616, %v1726
        %v1741 = vadd.f32 %v1617, %v1729
        %v1742 = vadd.f32 %v1618, %v1734
        %v1743 = vadd.f32 %v1619, %v1737
        %s1744 = scalar_lea.vmem %s1, 24
        %v1745 = vld [vmem:[%s1744] sm:$0x3]
        %v1747 = vand.u32 %v1745, %v254
        %1749 = vmatprep.subr.bf16.mxu0 0
        %1750 = vmatpush1.bf16.msra.mxu0 0
        %1751 = vmatprep.subr.bf16.mxu0 0
        %1752 = vmatpush1.bf16.msra.mxu0 0
        %1753 = vmatprep.subr.bf16.mxu0 0
        %1754 = vmatpush1.bf16.msra.mxu0 0
        %1755 = vmatprep.subr.bf16.mxu0 0
        %1756 = vmatpush1.bf16.msra.mxu0 0
        %1757 = vmatprep.subr.bf16.mxu0 0
        %1758 = vmatpush1.bf16.msra.mxu0 0
        %1759 = vmatprep.subr.bf16.mxu0 0
        %1760 = vmatpush1.bf16.msra.mxu0 0
        %1761 = vmatprep.subr.bf16.mxu0 0
        %1762 = vmatpush1.bf16.msra.mxu0 0
        %1763 = vmatprep.subr.bf16.mxu0 0
        %1764 = vmatpush1.bf16.msra.mxu0 %v1747
        %1765 = vmatprep.subr.bf16.mxu0 0
        %1766 = vmatpush2.bf16.msra.mxu0 0
        %1767 = vmatprep.subr.bf16.mxu0 0
        %1768 = vmatpush2.bf16.msra.mxu0 0
        %1769 = vmatprep.subr.bf16.mxu0 0
        %1770 = vmatpush2.bf16.msra.mxu0 0
        %1771 = vmatprep.subr.bf16.mxu0 0
        %1772 = vmatpush2.bf16.msra.mxu0 0
        %1773 = vmatprep.subr.bf16.mxu0 0
        %1774 = vmatpush2.bf16.msra.mxu0 0
        %1775 = vmatprep.subr.bf16.mxu0 0
        %1776 = vmatpush2.bf16.msra.mxu0 0
        %1777 = vmatprep.subr.bf16.mxu0 0
        %1778 = vmatpush2.bf16.msra.mxu0 0
        %1779 = vmatprep.subr.bf16.mxu0 0
        %1780 = vmatpush2.bf16.msra.mxu0 0
        %1781 = vmatprep.mubr.bf16.mxu0 0
        %1782 = vmatmul.mubr.bf16.gmra.mxu0 %v1310
        %v1783 = vpop.f32.mrf.mxu0
        %v1784 = vadd.f32 0.0, %v1783
        %v1785 = vpop.f32.mrf.mxu0
        %v1786 = vpop.f32.mrf.mxu0
        %v1787 = vadd.f32 0.0, %v1786
        %v1788 = vpop.f32.mrf.mxu0
        %1789 = vmatprep.mubr.bf16.mxu0 0
        %1790 = vmatmul.mubr.bf16.gmra.mxu0 %v1313
        %v1791 = vpop.f32.mrf.mxu0
        %v1792 = vadd.f32 0.0, %v1791
        %v1793 = vpop.f32.mrf.mxu0
        %v1794 = vpop.f32.mrf.mxu0
        %v1795 = vadd.f32 0.0, %v1794
        %v1796 = vpop.f32.mrf.mxu0
        %1797 = vdwg.mxu0
        %v1798 = vadd.f32 %v1674, %v1784
        %v1799 = vadd.f32 %v1675, %v1787
        %v1800 = vadd.f32 %v1676, %v1792
        %v1801 = vadd.f32 %v1677, %v1795
        %v1803 = vsel %vm244, %v223, 0
        %v1806 = vsel %vm244, %v224, 0
        %1808 = vmatprep.subr.bf16.mxu0 0
        %1809 = vmatpush1.bf16.msra.mxu0 0
        %1810 = vmatprep.subr.bf16.mxu0 0
        %1811 = vmatpush1.bf16.msra.mxu0 0
        %1812 = vmatprep.subr.bf16.mxu0 0
        %1813 = vmatpush1.bf16.msra.mxu0 0
        %1814 = vmatprep.subr.bf16.mxu0 0
        %1815 = vmatpush1.bf16.msra.mxu0 0
        %1816 = vmatprep.subr.bf16.mxu0 0
        %1817 = vmatpush1.bf16.msra.mxu0 0
        %1818 = vmatprep.subr.bf16.mxu0 0
        %1819 = vmatpush1.bf16.msra.mxu0 0
        %1820 = vmatprep.subr.bf16.mxu0 0
        %1821 = vmatpush1.bf16.msra.mxu0 0
        %1822 = vmatprep.subr.bf16.mxu0 0
        %1823 = vmatpush1.bf16.msra.mxu0 %v1747
        %1824 = vmatprep.subr.bf16.mxu0 0
        %1825 = vmatpush2.bf16.msra.mxu0 0
        %1826 = vmatprep.subr.bf16.mxu0 0
        %1827 = vmatpush2.bf16.msra.mxu0 0
        %1828 = vmatprep.subr.bf16.mxu0 0
        %1829 = vmatpush2.bf16.msra.mxu0 0
        %1830 = vmatprep.subr.bf16.mxu0 0
        %1831 = vmatpush2.bf16.msra.mxu0 0
        %1832 = vmatprep.subr.bf16.mxu0 0
        %1833 = vmatpush2.bf16.msra.mxu0 0
        %1834 = vmatprep.subr.bf16.mxu0 0
        %1835 = vmatpush2.bf16.msra.mxu0 0
        %1836 = vmatprep.subr.bf16.mxu0 0
        %1837 = vmatpush2.bf16.msra.mxu0 0
        %1838 = vmatprep.subr.bf16.mxu0 0
        %1839 = vmatpush2.bf16.msra.mxu0 0
        %1840 = vmatprep.mubr.bf16.mxu0 0
        %1841 = vmatmul.mubr.bf16.gmra.mxu0 %v1803
        %v1842 = vpop.f32.mrf.mxu0
        %v1843 = vadd.f32 0.0, %v1842
        %v1844 = vpop.f32.mrf.mxu0
        %v1845 = vpop.f32.mrf.mxu0
        %v1846 = vadd.f32 0.0, %v1845
        %v1847 = vpop.f32.mrf.mxu0
        %1848 = vmatprep.mubr.bf16.mxu0 0
        %1849 = vmatmul.mubr.bf16.gmra.mxu0 %v1806
        %v1850 = vpop.f32.mrf.mxu0
        %v1851 = vadd.f32 0.0, %v1850
        %v1852 = vpop.f32.mrf.mxu0
        %v1853 = vpop.f32.mrf.mxu0
        %v1854 = vadd.f32 0.0, %v1853
        %v1855 = vpop.f32.mrf.mxu0
        %1856 = vdwg.mxu0
        %v1857 = vadd.f32 %v1740, %v1843
        %v1858 = vadd.f32 %v1741, %v1846
        %v1859 = vadd.f32 %v1742, %v1851
        %v1860 = vadd.f32 %v1743, %v1854
        %s1861 = scalar_lea.vmem %s1, 26
        %v1862 = vld [vmem:[%s1861] sm:$0x3]
        %v1864 = vand.u32 %v1862, %v254
        %1866 = vmatprep.subr.bf16.mxu0 0
        %1867 = vmatpush1.bf16.msra.mxu0 0
        %1868 = vmatprep.subr.bf16.mxu0 0
        %1869 = vmatpush1.bf16.msra.mxu0 0
        %1870 = vmatprep.subr.bf16.mxu0 0
        %1871 = vmatpush1.bf16.msra.mxu0 0
        %1872 = vmatprep.subr.bf16.mxu0 0
        %1873 = vmatpush1.bf16.msra.mxu0 0
        %1874 = vmatprep.subr.bf16.mxu0 0
        %1875 = vmatpush1.bf16.msra.mxu0 0
        %1876 = vmatprep.subr.bf16.mxu0 0
        %1877 = vmatpush1.bf16.msra.mxu0 0
        %1878 = vmatprep.subr.bf16.mxu0 0
        %1879 = vmatpush1.bf16.msra.mxu0 0
        %1880 = vmatprep.subr.bf16.mxu0 0
        %1881 = vmatpush1.bf16.msra.mxu0 %v1864
        %1882 = vmatprep.subr.bf16.mxu0 0
        %1883 = vmatpush2.bf16.msra.mxu0 0
        %1884 = vmatprep.subr.bf16.mxu0 0
        %1885 = vmatpush2.bf16.msra.mxu0 0
        %1886 = vmatprep.subr.bf16.mxu0 0
        %1887 = vmatpush2.bf16.msra.mxu0 0
        %1888 = vmatprep.subr.bf16.mxu0 0
        %1889 = vmatpush2.bf16.msra.mxu0 0
        %1890 = vmatprep.subr.bf16.mxu0 0
        %1891 = vmatpush2.bf16.msra.mxu0 0
        %1892 = vmatprep.subr.bf16.mxu0 0
        %1893 = vmatpush2.bf16.msra.mxu0 0
        %1894 = vmatprep.subr.bf16.mxu0 0
        %1895 = vmatpush2.bf16.msra.mxu0 0
        %1896 = vmatprep.subr.bf16.mxu0 0
        %1897 = vmatpush2.bf16.msra.mxu0 0
        %1898 = vmatprep.mubr.bf16.mxu0 0
        %1899 = vmatmul.mubr.bf16.gmra.mxu0 %v1440
        %v1900 = vpop.f32.mrf.mxu0
        %v1901 = vadd.f32 0.0, %v1900
        %v1902 = vpop.f32.mrf.mxu0
        %v1903 = vpop.f32.mrf.mxu0
        %v1904 = vadd.f32 0.0, %v1903
        %v1905 = vpop.f32.mrf.mxu0
        %1906 = vmatprep.mubr.bf16.mxu0 0
        %1907 = vmatmul.mubr.bf16.gmra.mxu0 %v1443
        %v1908 = vpop.f32.mrf.mxu0
        %v1909 = vadd.f32 0.0, %v1908
        %v1910 = vpop.f32.mrf.mxu0
        %v1911 = vpop.f32.mrf.mxu0
        %v1912 = vadd.f32 0.0, %v1911
        %v1913 = vpop.f32.mrf.mxu0
        %1914 = vdwg.mxu0
        %v1915 = vadd.f32 %v1798, %v1901
        %v1916 = vadd.f32 %v1799, %v1904
        %v1917 = vadd.f32 %v1800, %v1909
        %v1918 = vadd.f32 %v1801, %v1912
        %v1919 = vshrl.u32 %v223, 16
        %v1921 = vshll.u32 %v223, 16
        %v1923 = vrot.slane %v1921, 1
        %v1924 = vor.u32 %v1919, %v1923
        %v1925 = vshll.u32 %v224, 16
        %v1927 = vrot.slane %v1925, 1
        %v1928 = vsel %vm228, %v1924, %v1927
        %v1929 = vshrl.u32 %v224, 16
        %v1931 = vor.u32 %v1929, %v1927
        %v1933 = vsel %vm244, %v1928, 0
        %v1936 = vsel %vm244, %v1931, 0
        %1938 = vmatprep.subr.bf16.mxu0 0
        %1939 = vmatpush1.bf16.msra.mxu0 0
        %1940 = vmatprep.subr.bf16.mxu0 0
        %1941 = vmatpush1.bf16.msra.mxu0 0
        %1942 = vmatprep.subr.bf16.mxu0 0
        %1943 = vmatpush1.bf16.msra.mxu0 0
        %1944 = vmatprep.subr.bf16.mxu0 0
        %1945 = vmatpush1.bf16.msra.mxu0 0
        %1946 = vmatprep.subr.bf16.mxu0 0
        %1947 = vmatpush1.bf16.msra.mxu0 0
        %1948 = vmatprep.subr.bf16.mxu0 0
        %1949 = vmatpush1.bf16.msra.mxu0 0
        %1950 = vmatprep.subr.bf16.mxu0 0
        %1951 = vmatpush1.bf16.msra.mxu0 0
        %1952 = vmatprep.subr.bf16.mxu0 0
        %1953 = vmatpush1.bf16.msra.mxu0 %v1864
        %1954 = vmatprep.subr.bf16.mxu0 0
        %1955 = vmatpush2.bf16.msra.mxu0 0
        %1956 = vmatprep.subr.bf16.mxu0 0
        %1957 = vmatpush2.bf16.msra.mxu0 0
        %1958 = vmatprep.subr.bf16.mxu0 0
        %1959 = vmatpush2.bf16.msra.mxu0 0
        %1960 = vmatprep.subr.bf16.mxu0 0
        %1961 = vmatpush2.bf16.msra.mxu0 0
        %1962 = vmatprep.subr.bf16.mxu0 0
        %1963 = vmatpush2.bf16.msra.mxu0 0
        %1964 = vmatprep.subr.bf16.mxu0 0
        %1965 = vmatpush2.bf16.msra.mxu0 0
        %1966 = vmatprep.subr.bf16.mxu0 0
        %1967 = vmatpush2.bf16.msra.mxu0 0
        %1968 = vmatprep.subr.bf16.mxu0 0
        %1969 = vmatpush2.bf16.msra.mxu0 0
        %1970 = vmatprep.mubr.bf16.mxu0 0
        %1971 = vmatmul.mubr.bf16.gmra.mxu0 %v1933
        %v1972 = vpop.f32.mrf.mxu0
        %v1973 = vadd.f32 0.0, %v1972
        %v1974 = vpop.f32.mrf.mxu0
        %v1975 = vpop.f32.mrf.mxu0
        %v1976 = vadd.f32 0.0, %v1975
        %v1977 = vpop.f32.mrf.mxu0
        %1978 = vmatprep.mubr.bf16.mxu0 0
        %1979 = vmatmul.mubr.bf16.gmra.mxu0 %v1936
        %v1980 = vpop.f32.mrf.mxu0
        %v1981 = vadd.f32 0.0, %v1980
        %v1982 = vpop.f32.mrf.mxu0
        %v1983 = vpop.f32.mrf.mxu0
        %v1984 = vadd.f32 0.0, %v1983
        %v1985 = vpop.f32.mrf.mxu0
        %1986 = vdwg.mxu0
        %v1987 = vadd.f32 %v1857, %v1973
        %v1988 = vadd.f32 %v1858, %v1976
        %v1989 = vadd.f32 %v1859, %v1981
        %v1990 = vadd.f32 %v1860, %v1984
        %s1991 = scalar_lea.vmem %s1, 28
        %v1992 = vld [vmem:[%s1991] sm:$0x3]
        %v1994 = vand.u32 %v1992, %v254
        %1996 = vmatprep.subr.bf16.mxu0 0
        %1997 = vmatpush1.bf16.msra.mxu0 0
        %1998 = vmatprep.subr.bf16.mxu0 0
        %1999 = vmatpush1.bf16.msra.mxu0 0
        %2000 = vmatprep.subr.bf16.mxu0 0
        %2001 = vmatpush1.bf16.msra.mxu0 0
        %2002 = vmatprep.subr.bf16.mxu0 0
        %2003 = vmatpush1.bf16.msra.mxu0 0
        %2004 = vmatprep.subr.bf16.mxu0 0
        %2005 = vmatpush1.bf16.msra.mxu0 0
        %2006 = vmatprep.subr.bf16.mxu0 0
        %2007 = vmatpush1.bf16.msra.mxu0 0
        %2008 = vmatprep.subr.bf16.mxu0 0
        %2009 = vmatpush1.bf16.msra.mxu0 0
        %2010 = vmatprep.subr.bf16.mxu0 0
        %2011 = vmatpush1.bf16.msra.mxu0 %v1994
        %2012 = vmatprep.subr.bf16.mxu0 0
        %2013 = vmatpush2.bf16.msra.mxu0 0
        %2014 = vmatprep.subr.bf16.mxu0 0
        %2015 = vmatpush2.bf16.msra.mxu0 0
        %2016 = vmatprep.subr.bf16.mxu0 0
        %2017 = vmatpush2.bf16.msra.mxu0 0
        %2018 = vmatprep.subr.bf16.mxu0 0
        %2019 = vmatpush2.bf16.msra.mxu0 0
        %2020 = vmatprep.subr.bf16.mxu0 0
        %2021 = vmatpush2.bf16.msra.mxu0 0
        %2022 = vmatprep.subr.bf16.mxu0 0
        %2023 = vmatpush2.bf16.msra.mxu0 0
        %2024 = vmatprep.subr.bf16.mxu0 0
        %2025 = vmatpush2.bf16.msra.mxu0 0
        %2026 = vmatprep.subr.bf16.mxu0 0
        %2027 = vmatpush2.bf16.msra.mxu0 0
        %2028 = vmatprep.mubr.bf16.mxu0 0
        %2029 = vmatmul.mubr.bf16.gmra.mxu0 %v1562
        %v2030 = vpop.f32.mrf.mxu0
        %v2031 = vadd.f32 0.0, %v2030
        %v2032 = vpop.f32.mrf.mxu0
        %v2033 = vpop.f32.mrf.mxu0
        %v2034 = vadd.f32 0.0, %v2033
        %v2035 = vpop.f32.mrf.mxu0
        %2036 = vmatprep.mubr.bf16.mxu0 0
        %2037 = vmatmul.mubr.bf16.gmra.mxu0 %v1565
        %v2038 = vpop.f32.mrf.mxu0
        %v2039 = vadd.f32 0.0, %v2038
        %v2040 = vpop.f32.mrf.mxu0
        %v2041 = vpop.f32.mrf.mxu0
        %v2042 = vadd.f32 0.0, %v2041
        %v2043 = vpop.f32.mrf.mxu0
        %2044 = vdwg.mxu0
        %v2045 = vadd.f32 %v1915, %v2031
        %v2046 = vadd.f32 %v1916, %v2034
        %v2047 = vadd.f32 %v1917, %v2039
        %v2048 = vadd.f32 %v1918, %v2042
        %v2051 = vrot.slane %v223, 1
        %v2052 = vrot.slane %v224, 1
        %v2053 = vsel %vm490, %v2051, %v2052
        %v2055 = vsel %vm244, %v2053, 0
        %v2058 = vsel %vm244, %v2052, 0
        %2060 = vmatprep.subr.bf16.mxu0 0
        %2061 = vmatpush1.bf16.msra.mxu0 0
        %2062 = vmatprep.subr.bf16.mxu0 0
        %2063 = vmatpush1.bf16.msra.mxu0 0
        %2064 = vmatprep.subr.bf16.mxu0 0
        %2065 = vmatpush1.bf16.msra.mxu0 0
        %2066 = vmatprep.subr.bf16.mxu0 0
        %2067 = vmatpush1.bf16.msra.mxu0 0
        %2068 = vmatprep.subr.bf16.mxu0 0
        %2069 = vmatpush1.bf16.msra.mxu0 0
        %2070 = vmatprep.subr.bf16.mxu0 0
        %2071 = vmatpush1.bf16.msra.mxu0 0
        %2072 = vmatprep.subr.bf16.mxu0 0
        %2073 = vmatpush1.bf16.msra.mxu0 0
        %2074 = vmatprep.subr.bf16.mxu0 0
        %2075 = vmatpush1.bf16.msra.mxu0 %v1994
        %2076 = vmatprep.subr.bf16.mxu0 0
        %2077 = vmatpush2.bf16.msra.mxu0 0
        %2078 = vmatprep.subr.bf16.mxu0 0
        %2079 = vmatpush2.bf16.msra.mxu0 0
        %2080 = vmatprep.subr.bf16.mxu0 0
        %2081 = vmatpush2.bf16.msra.mxu0 0
        %2082 = vmatprep.subr.bf16.mxu0 0
        %2083 = vmatpush2.bf16.msra.mxu0 0
        %2084 = vmatprep.subr.bf16.mxu0 0
        %2085 = vmatpush2.bf16.msra.mxu0 0
        %2086 = vmatprep.subr.bf16.mxu0 0
        %2087 = vmatpush2.bf16.msra.mxu0 0
        %2088 = vmatprep.subr.bf16.mxu0 0
        %2089 = vmatpush2.bf16.msra.mxu0 0
        %2090 = vmatprep.subr.bf16.mxu0 0
        %2091 = vmatpush2.bf16.msra.mxu0 0
        %2092 = vmatprep.mubr.bf16.mxu0 0
        %2093 = vmatmul.mubr.bf16.gmra.mxu0 %v2055
        %v2094 = vpop.f32.mrf.mxu0
        %v2095 = vadd.f32 0.0, %v2094
        %v2096 = vpop.f32.mrf.mxu0
        %v2097 = vpop.f32.mrf.mxu0
        %v2098 = vadd.f32 0.0, %v2097
        %v2099 = vpop.f32.mrf.mxu0
        %2100 = vmatprep.mubr.bf16.mxu0 0
        %2101 = vmatmul.mubr.bf16.gmra.mxu0 %v2058
        %v2102 = vpop.f32.mrf.mxu0
        %v2103 = vadd.f32 0.0, %v2102
        %v2104 = vpop.f32.mrf.mxu0
        %v2105 = vpop.f32.mrf.mxu0
        %v2106 = vadd.f32 0.0, %v2105
        %v2107 = vpop.f32.mrf.mxu0
        %2108 = vdwg.mxu0
        %v2109 = vadd.f32 %v1987, %v2095
        %v2110 = vadd.f32 %v1988, %v2098
        %v2111 = vadd.f32 %v1989, %v2103
        %v2112 = vadd.f32 %v1990, %v2106
        %s2113 = scalar_lea.vmem %s1, 30
        %v2114 = vld [vmem:[%s2113] sm:$0x3]
        %v2116 = vand.u32 %v2114, %v254
        %2118 = vmatprep.subr.bf16.mxu0 0
        %2119 = vmatpush1.bf16.msra.mxu0 0
        %2120 = vmatprep.subr.bf16.mxu0 0
        %2121 = vmatpush1.bf16.msra.mxu0 0
        %2122 = vmatprep.subr.bf16.mxu0 0
        %2123 = vmatpush1.bf16.msra.mxu0 0
        %2124 = vmatprep.subr.bf16.mxu0 0
        %2125 = vmatpush1.bf16.msra.mxu0 0
        %2126 = vmatprep.subr.bf16.mxu0 0
        %2127 = vmatpush1.bf16.msra.mxu0 0
        %2128 = vmatprep.subr.bf16.mxu0 0
        %2129 = vmatpush1.bf16.msra.mxu0 0
        %2130 = vmatprep.subr.bf16.mxu0 0
        %2131 = vmatpush1.bf16.msra.mxu0 0
        %2132 = vmatprep.subr.bf16.mxu0 0
        %2133 = vmatpush1.bf16.msra.mxu0 %v2116
        %2134 = vmatprep.subr.bf16.mxu0 0
        %2135 = vmatpush2.bf16.msra.mxu0 0
        %2136 = vmatprep.subr.bf16.mxu0 0
        %2137 = vmatpush2.bf16.msra.mxu0 0
        %2138 = vmatprep.subr.bf16.mxu0 0
        %2139 = vmatpush2.bf16.msra.mxu0 0
        %2140 = vmatprep.subr.bf16.mxu0 0
        %2141 = vmatpush2.bf16.msra.mxu0 0
        %2142 = vmatprep.subr.bf16.mxu0 0
        %2143 = vmatpush2.bf16.msra.mxu0 0
        %2144 = vmatprep.subr.bf16.mxu0 0
        %2145 = vmatpush2.bf16.msra.mxu0 0
        %2146 = vmatprep.subr.bf16.mxu0 0
        %2147 = vmatpush2.bf16.msra.mxu0 0
        %2148 = vmatprep.subr.bf16.mxu0 0
        %2149 = vmatpush2.bf16.msra.mxu0 0
        %2150 = vmatprep.mubr.bf16.mxu0 0
        %2151 = vmatmul.mubr.bf16.gmra.mxu0 %v1686
        %v2152 = vpop.f32.mrf.mxu0
        %v2153 = vadd.f32 0.0, %v2152
        %v2154 = vpop.f32.mrf.mxu0
        %v2155 = vpop.f32.mrf.mxu0
        %v2156 = vadd.f32 0.0, %v2155
        %v2157 = vpop.f32.mrf.mxu0
        %2158 = vmatprep.mubr.bf16.mxu0 0
        %2159 = vmatmul.mubr.bf16.gmra.mxu0 %v1689
        %v2160 = vpop.f32.mrf.mxu0
        %v2161 = vadd.f32 0.0, %v2160
        %v2162 = vpop.f32.mrf.mxu0
        %v2163 = vpop.f32.mrf.mxu0
        %v2164 = vadd.f32 0.0, %v2163
        %v2165 = vpop.f32.mrf.mxu0
        %2166 = vdwg.mxu0
        %v2167 = vadd.f32 %v2045, %v2153
        %v2168 = vadd.f32 %v2046, %v2156
        %v2169 = vadd.f32 %v2047, %v2161
        %v2170 = vadd.f32 %v2048, %v2164
        %v2171 = vrot.slane %v1919, 1
        %v2172 = vrot.slane %v1921, 2
        %v2173 = vor.u32 %v2171, %v2172
        %v2174 = vrot.slane %v1929, 1
        %v2175 = vrot.slane %v1925, 2
        %v2176 = vor.u32 %v2174, %v2175
        %v2177 = vsel %vm622, %v2173, %v2176
        %v2179 = vsel %vm244, %v2177, 0
        %v2182 = vsel %vm244, %v2176, 0
        %2184 = vmatprep.subr.bf16.mxu0 0
        %2185 = vmatpush1.bf16.msra.mxu0 0
        %2186 = vmatprep.subr.bf16.mxu0 0
        %2187 = vmatpush1.bf16.msra.mxu0 0
        %2188 = vmatprep.subr.bf16.mxu0 0
        %2189 = vmatpush1.bf16.msra.mxu0 0
        %2190 = vmatprep.subr.bf16.mxu0 0
        %2191 = vmatpush1.bf16.msra.mxu0 0
        %2192 = vmatprep.subr.bf16.mxu0 0
        %2193 = vmatpush1.bf16.msra.mxu0 0
        %2194 = vmatprep.subr.bf16.mxu0 0
        %2195 = vmatpush1.bf16.msra.mxu0 0
        %2196 = vmatprep.subr.bf16.mxu0 0
        %2197 = vmatpush1.bf16.msra.mxu0 0
        %2198 = vmatprep.subr.bf16.mxu0 0
        %2199 = vmatpush1.bf16.msra.mxu0 %v2116
        %2200 = vmatprep.subr.bf16.mxu0 0
        %2201 = vmatpush2.bf16.msra.mxu0 0
        %2202 = vmatprep.subr.bf16.mxu0 0
        %2203 = vmatpush2.bf16.msra.mxu0 0
        %2204 = vmatprep.subr.bf16.mxu0 0
        %2205 = vmatpush2.bf16.msra.mxu0 0
        %2206 = vmatprep.subr.bf16.mxu0 0
        %2207 = vmatpush2.bf16.msra.mxu0 0
        %2208 = vmatprep.subr.bf16.mxu0 0
        %2209 = vmatpush2.bf16.msra.mxu0 0
        %2210 = vmatprep.subr.bf16.mxu0 0
        %2211 = vmatpush2.bf16.msra.mxu0 0
        %2212 = vmatprep.subr.bf16.mxu0 0
        %2213 = vmatpush2.bf16.msra.mxu0 0
        %2214 = vmatprep.subr.bf16.mxu0 0
        %2215 = vmatpush2.bf16.msra.mxu0 0
        %2216 = vmatprep.mubr.bf16.mxu0 0
        %2217 = vmatmul.mubr.bf16.gmra.mxu0 %v2179
        %v2218 = vpop.f32.mrf.mxu0
        %v2219 = vadd.f32 0.0, %v2218
        %v2220 = vpop.f32.mrf.mxu0
        %v2221 = vpop.f32.mrf.mxu0
        %v2222 = vadd.f32 0.0, %v2221
        %v2223 = vpop.f32.mrf.mxu0
        %2224 = vmatprep.mubr.bf16.mxu0 0
        %2225 = vmatmul.mubr.bf16.gmra.mxu0 %v2182
        %v2226 = vpop.f32.mrf.mxu0
        %v2227 = vadd.f32 0.0, %v2226
        %v2228 = vpop.f32.mrf.mxu0
        %v2229 = vpop.f32.mrf.mxu0
        %v2230 = vadd.f32 0.0, %v2229
        %v2231 = vpop.f32.mrf.mxu0
        %2232 = vdwg.mxu0
        %v2233 = vadd.f32 %v2109, %v2219
        %v2234 = vadd.f32 %v2110, %v2222
        %v2235 = vadd.f32 %v2111, %v2227
        %v2236 = vadd.f32 %v2112, %v2230
        %v2238 = vlaneseq
        %v2239 = vshrl.u32 %v2238, 7
        %v2240 = vsub.s32 0, %v2239
        %v2241 = vrot.slane %v172, %v2240
        %v2243 = vadd.f32 %v2167, %v2241
        %v2244 = vadd.f32 %v2168, %v2241
        %v2245 = vadd.f32 %v2169, %v2241
        %v2246 = vadd.f32 %v2170, %v2241
        %v2247 = vmax.f32 %v2243, 0.0
        %v2248 = vmax.f32 %v2244, 0.0
        %v2249 = vmax.f32 %v2245, 0.0
        %v2250 = vmax.f32 %v2246, 0.0
        %v2251 = vadd.f32 %v2233, %v2241
        %v2252 = vadd.f32 %v2234, %v2241
        %v2253 = vadd.f32 %v2235, %v2241
        %v2254 = vadd.f32 %v2236, %v2241
        %v2255 = vmax.f32 %v2251, 0.0
        %v2256 = vmax.f32 %v2252, 0.0
        %v2257 = vmax.f32 %v2253, 0.0
        %v2258 = vmax.f32 %v2254, 0.0
        %v2259 = vmax.f32 %v2247, %v2255
        %v2260 = vmax.f32 %v2248, %v2256
        %v2261 = vmax.f32 %v2249, %v2257
        %v2262 = vmax.f32 %v2250, %v2258
        %vm2267 = vcmask 1046528
        %v2268 = vrot.slane %v2259, 1
        %v2269 = vrot.slane %v2260, 1
        %v2270 = vsel %vm2267, %v2268, %v2269
        %v2271 = vrot.slane %v2261, 1
        %v2272 = vsel %vm2267, %v2269, %v2271
        %v2273 = vrot.slane %v2262, 1
        %v2274 = vsel %vm2267, %v2271, %v2273
        %v2279 = vmax.f32 %v2259, %v2270
        %v2280 = vmax.f32 %v2260, %v2272
        %v2281 = vmax.f32 %v2261, %v2274
        %v2282 = vmax.f32 %v2262, %v2273
        %vm2283 = vcmask 228352
        %v2285 = vsel %vm2283, %v184, 0
        %v2288 = vsel %vm2283, %v185, 0
        %vm2290 = vcmask 1043456
        %v2292 = vsel %vm2290, %v2282, 0
        %2294 = vmatprep.subr.mxu0 0.0
        %2295 = vmatpush1.msra.mxu0 0.0
        %2296 = vmatprep.subr.mxu0 0.0
        %2297 = vmatpush1.msra.mxu0 0.0
        %2298 = vmatprep.subr.mxu0 0.0
        %2299 = vmatpush1.msra.mxu0 0.0
        %2300 = vmatprep.subr.mxu0 0.0
        %2301 = vmatpush1.msra.mxu0 0.0
        %2302 = vmatprep.subr.mxu0 0.0
        %2303 = vmatpush1.msra.mxu0 0.0
        %2304 = vmatprep.subr.mxu0 0.0
        %2305 = vmatpush1.msra.mxu0 0.0
        %2306 = vmatprep.subr.mxu0 0.0
        %2307 = vmatpush1.msra.mxu0 0.0
        %2308 = vmatprep.subr.mxu0 0.0
        %2309 = vmatpush1.msra.mxu0 0.0
        %2310 = vmatprep.subr.mxu0 0.0
        %2311 = vmatpush1.msra.mxu0 0.0
        %2312 = vmatprep.subr.mxu0 0.0
        %2313 = vmatpush1.msra.mxu0 0.0
        %2314 = vmatprep.subr.mxu0 0.0
        %2315 = vmatpush1.msra.mxu0 0.0
        %2316 = vmatprep.subr.mxu0 0.0
        %2317 = vmatpush1.msra.mxu0 0.0
        %2318 = vmatprep.subr.mxu0 0.0
        %2319 = vmatpush1.msra.mxu0 %v2292
        %2320 = vmatprep.subr.mxu0 0.0
        %2321 = vmatpush1.msra.mxu0 %v2281
        %2322 = vmatprep.subr.mxu0 0.0
        %2323 = vmatpush1.msra.mxu0 %v2280
        %2324 = vmatprep.subr.mxu0 0.0
        %2325 = vmatpush1.msra.mxu0 %v2279
        %2326 = vmatprep.subr.mxu0 0.0
        %2327 = vmatpush2.msra.mxu0 0.0
        %2328 = vmatprep.subr.mxu0 0.0
        %2329 = vmatpush2.msra.mxu0 0.0
        %2330 = vmatprep.subr.mxu0 0.0
        %2331 = vmatpush2.msra.mxu0 0.0
        %2332 = vmatprep.subr.mxu0 0.0
        %2333 = vmatpush2.msra.mxu0 0.0
        %2334 = vmatprep.subr.mxu0 0.0
        %2335 = vmatpush2.msra.mxu0 0.0
        %2336 = vmatprep.subr.mxu0 0.0
        %2337 = vmatpush2.msra.mxu0 0.0
        %2338 = vmatprep.subr.mxu0 0.0
        %2339 = vmatpush2.msra.mxu0 0.0
        %2340 = vmatprep.subr.mxu0 0.0
        %2341 = vmatpush2.msra.mxu0 0.0
        %2342 = vmatprep.subr.mxu0 0.0
        %2343 = vmatpush2.msra.mxu0 0.0
        %2344 = vmatprep.subr.mxu0 0.0
        %2345 = vmatpush2.msra.mxu0 0.0
        %2346 = vmatprep.subr.mxu0 0.0
        %2347 = vmatpush2.msra.mxu0 0.0
        %2348 = vmatprep.subr.mxu0 0.0
        %2349 = vmatpush2.msra.mxu0 0.0
        %2350 = vmatprep.subr.mxu0 0.0
        %2351 = vmatpush2.msra.mxu0 0.0
        %2352 = vmatprep.subr.mxu0 0.0
        %2353 = vmatpush2.msra.mxu0 0.0
        %2354 = vmatprep.subr.mxu0 0.0
        %2355 = vmatpush2.msra.mxu0 0.0
        %2356 = vmatprep.subr.mxu0 0.0
        %2357 = vmatpush2.msra.mxu0 0.0
        %2358 = vmatprep.mubr.f32.mxu0 0.0
        %2359 = vmatmul.mubr.f32.gmra.mxu0 %v2285
        %v2360 = vpop.f32.mrf.mxu0
        %v2361 = vadd.f32 0.0, %v2360
        %v2362 = vpop.f32.mrf.mxu0
        %2363 = vmatprep.mubr.f32.mxu0 0.0
        %2364 = vmatmul.mubr.f32.gmra.mxu0 %v2288
        %v2365 = vpop.f32.mrf.mxu0
        %v2366 = vadd.f32 0.0, %v2365
        %v2367 = vpop.f32.mrf.mxu0
        %2368 = vdwg.mxu0
        %s2369 = smul.u32 %s187, 16
        %s2370 = scalar_lea.vmem %s170, %s2369
        %2371 = vst [vmem:[%s2370] sm:$0xff] %v2361
        %2372 = vst [vmem:[%s2370 + $0x8] sm:$0x3f] %v2366
      $region37: #{tpu_custom_call.1} parent=31 // loop_footer
        %s191 = sadd.s32 1, %s187
      $region38: #{tpu_custom_call.1} parent=31 // loop_footer_branch
        %186 = sbr.rel target = $region34
      $region39: #{tpu_custom_call.1} parent=31 // loop_exit
        _
      %p2373 = scmp.lt.s32.totalorder %s14, 1
      %s2374 = scalar_select %p2373, %s14, 1
      %s2375 = smul.addr %s2374, 28
      %s2376 = smul.addr %s2375, 8
      %s2377 = scalar_lea.vmem %s3, %s2376
      // Predicated region
      $region40: #{tpu_custom_call.1} parent=31 // pred_check
        %p2378 = pneg %p100
      $region41: #{tpu_custom_call.1} parent=31 // pred_check_branch
        %2380 = sbr.rel (%p2378) target = $region43
      $region42: #{tpu_custom_call.1} parent=31 // pred_region
        _
      $region43: #{tpu_custom_call.1} parent=31 // pred_fallthru
        _
    $region32: #{tpu_custom_call.1} parent=5 // pred_fallthru
      _
    %p2381 = scmp.le.s32.totalorder 2, %s9
    // Predicated region
    $region44: #{tpu_custom_call.1} parent=5 // pred_check
      %p2382 = pneg %p2381
    $region45: #{tpu_custom_call.1} parent=5 // pred_check_branch
      %2384 = sbr.rel (%p2382) target = $region47
    $region46: #{tpu_custom_call.1} parent=5 // pred_region
      %s2385 = ssub.s32 %s9, 2
      // Predicated region
      $region48: #{tpu_custom_call.1} parent=46 // pred_check
        %p2386 = pneg %p106
      $region49: #{tpu_custom_call.1} parent=46 // pred_check_branch
        %2388 = sbr.rel (%p2386) target = $region51
      $region50: #{tpu_custom_call.1} parent=46 // pred_region
        %p2389 = scmp.lt.s32.totalorder %s15, 1
        %s2390 = scalar_select %p2389, %s15, 1
        %s2391 = smul.addr %s2390, 28
        %s2392 = smul.addr %s2391, 8
        %s2393 = scalar_lea.vmem %s3, %s2392
      $region51: #{tpu_custom_call.1} parent=46 // pred_fallthru
        _
    $region47: #{tpu_custom_call.1} parent=5 // pred_fallthru
      _
  $region6: #{tpu_custom_call.1} parent=0 // loop_footer
    %s13 = sadd.s32 1, %s9
  $region7: #{tpu_custom_call.1} parent=0 // loop_footer_branch
    %8 = sbr.rel target = $region3
  $region8: #{tpu_custom_call.1} parent=0 // loop_exit
    _

</llo_original>
